<compile_context>
chip_gen: v7x
topology: tpu7x:2x2x1
jax: 0.10.0
libtpu: 0.0.40
codegen_flags: <defaults>
</compile_context>

<pallas_src>
import functools

import numpy as np
import jax
import jax.numpy as jnp
from jax import lax
from jax.experimental import pallas as pl
from jax.experimental.pallas import tpu as pltpu

NUM_CLASSES = 11
_EPS = 1e-8
_LANES = 128
_SUBLANES = 8


def _round_up(x, m):
    return (x + m - 1) // m * m


# --------------------------------------------------------------------------
# Pass 1: per-instance masked statistics from view1 (tiled over pixels).
# --------------------------------------------------------------------------
def _stats_kernel(masks_ref, v1_ref, s_ref, sq_ref, n_ref):
    """masks (K,tP) bf16, v1 (C,tP) bf16 -> accumulate s (K,C), sq (K,1), n (K,1)."""
    t = pl.program_id(1)

    @pl.when(t == 0)
    def _init():
        s_ref[...] = jnp.zeros_like(s_ref)
        sq_ref[...] = jnp.zeros_like(sq_ref)
        n_ref[...] = jnp.zeros_like(n_ref)

    m = masks_ref[...].astype(jnp.float32)            # (K, tP)
    v = v1_ref[...].astype(jnp.float32)               # (C, tP)

    # Masked per-channel sums: contract the pixel axis of both operands
    # directly (no host transpose, no duplicated HBM copy).
    s_ref[...] += lax.dot_general(m, v, (((1,), (1,)), ((), ())),
                                  preferred_element_type=jnp.float32)
    # Squared sums via a per-pixel channel reduction (VPU/XLU, no (P,C) temp).
    colsq = jnp.sum(v * v, axis=0, keepdims=True)                 # (1, tP)
    sq_ref[...] += jnp.sum(m * colsq, axis=1, keepdims=True)      # (K, 1)
    n_ref[...] += jnp.sum(m, axis=1, keepdims=True)               # (K, 1)


# --------------------------------------------------------------------------
# Pass 2: mean-vs-pixel cosine similarities against view2 (tiled over pixels).
# --------------------------------------------------------------------------
def _simmat_kernel(means_ref, masks_ref, v2_ref, out_ref):
    """Accumulate sum_p cos(mean_i, v2[:,p]) * mask_j[p]  -> (K, K)."""
    t = pl.program_id(1)

    @pl.when(t == 0)
    def _init():
        out_ref[...] = jnp.zeros_like(out_ref)

    means = means_ref[...]                             # (K, C) f32
    m = masks_ref[...].astype(jnp.float32)             # (K, tP)
    v = v2_ref[...].astype(jnp.float32)                # (C, tP)

    dots = lax.dot_general(means, v, (((1,), (0,)), ((), ())),
                           preferred_element_type=jnp.float32)    # (K, tP)
    mean_nsq = jnp.sum(means * means, axis=1, keepdims=True)      # (K, 1)
    pix_nsq = jnp.sum(v * v, axis=0, keepdims=True)               # (1, tP)
    # cos = dots / max(|mean| * |pix|, eps), done with a single EUP rsqrt.
    inv_den = lax.rsqrt(jnp.maximum(mean_nsq * pix_nsq, _EPS * _EPS))
    cos = dots * inv_den                                          # (K, tP)

    out_ref[...] += lax.dot_general(cos, m, (((1,), (1,)), ((), ())),
                                    preferred_element_type=jnp.float32)


# --------------------------------------------------------------------------
# Pass 3: tiny finalize — std, class scatter, negative groups, packed output.
# --------------------------------------------------------------------------
def _finalize_kernel(simraw_ref, pst_ref, nrow_ref, clsc_ref, clsr_ref, out_ref,
                     *, c_true):
    simraw = simraw_ref[...]            # (K, K): sum_p cos * mask_j
    pst = pst_ref[...]                  # (K, 3): [n_pix, sum(x^2), sum(x)]
    n_col = pst[:, 0:1]
    sqsum = pst[:, 1:2]
    ssum = pst[:, 2:3]
    n_row = nrow_ref[...]               # (1, K)
    cls_col = clsc_ref[...]             # (K, 1) int32 (padded rows = -1)
    cls_row = clsr_ref[...]             # (1, K)

    K = simraw.shape[0]

    # simmat[i, j] = mean over pixels of instance j of cos(mean_i, pixel).
    simmat = simraw / jnp.maximum(n_row, 1.0)

    # torch.std over the flattened (n_pix, C) gather, unbiased.
    # NOTE: one-pass formula in f32; adequate for feature-scale data, can lose
    # precision when |mean| >> spread (documented tolerance).
    n_elem = n_col * float(c_true)
    var = (sqsum - ssum * ssum / jnp.maximum(n_elem, 1.0)) / \
        jnp.maximum(n_elem - 1.0, 1.0)
    std = jnp.sqrt(jnp.maximum(var, 0.0))              # (K, 1)

    ii = lax.broadcasted_iota(jnp.int32, (K, K), 0)
    jj = lax.broadcasted_iota(jnp.int32, (K, K), 1)
    eye = (ii == jj).astype(jnp.float32)
    same = (cls_col == cls_row).astype(jnp.float32)
    diff = 1.0 - same

    diag_sim = jnp.sum(simmat * eye, axis=1, keepdims=True)                  # (K,1)
    same_off = jnp.sum(simmat * same * (1.0 - eye), axis=1, keepdims=True)   # (K,1)

    lane = lax.broadcasted_iota(jnp.int32, (K, _LANES), 1)
    onehot = (cls_col == lane).astype(jnp.float32)       # (K,128); lanes >= 11 never hit
    cls_count = jnp.sum(onehot, axis=0, keepdims=True)   # (1,128)

    inst_sim = jnp.sum(onehot * diag_sim, axis=0, keepdims=True)
    cls_sim = jnp.sum(onehot * same_off, axis=0, keepdims=True)
    cls_std = jnp.sum(onehot * std, axis=0, keepdims=True)

    # NOTE: the torch code's `np.sum(classes == class_)` is buggy (list==scalar);
    # we implement the intended per-class normalization with safe denominators.
    gt1 = cls_count > 1.0
    c_safe = jnp.maximum(cls_count, 1.0)
    c1_safe = jnp.maximum(cls_count - 1.0, 1.0)
    inst_sim = jnp.where(gt1, inst_sim / c_safe, inst_sim)
    cls_sim = jnp.where(gt1, cls_sim / (c_safe * c1_safe), cls_sim)
    cls_std = jnp.where(gt1, cls_std / c_safe, cls_std)

    def in_rng(c, lo, hi):
        return jnp.logical_and(c >= lo, c < hi).astype(jnp.float32)

    hum_c, hum_r = in_rng(cls_col, 1, 3), in_rng(cls_row, 1, 3)
    fw_c, fw_r = in_rng(cls_col, 3, 9), in_rng(cls_row, 3, 9)
    tw_c, tw_r = in_rng(cls_col, 9, 11), in_rng(cls_row, 9, 11)

    def neg_group(gc, gr):
        pair = diff * jnp.minimum(gc, 1.0) * jnp.minimum(gr, 1.0)      # (K,K)
        cnt = jnp.sum(jnp.sum(pair, axis=1, keepdims=True), axis=0, keepdims=True)
        acc = jnp.sum(jnp.sum(pair * simmat, axis=1, keepdims=True),
                      axis=0, keepdims=True)
        return jnp.where(cnt > 1.0, acc / jnp.maximum(cnt, 1.0), acc)  # (1,1)

    n4h = neg_group(hum_c + fw_c, hum_r + fw_r)
    n42 = neg_group(tw_c + fw_c, tw_r + fw_r)
    nh2 = neg_group(hum_c + tw_c, hum_r + tw_r)

    # Pack everything into one lane-dense (8,128) tile:
    #   row0 = instance_sim, row1 = class_sim, row2 = class_std,
    #   row3 = [neg_4wheel_human, neg_4wheel_2wheel, neg_human_2wheel, 0...].
    lane1 = lax.broadcasted_iota(jnp.int32, (1, _LANES), 1)
    neg_row = (n4h * (lane1 == 0).astype(jnp.float32)
               + n42 * (lane1 == 1).astype(jnp.float32)
               + nh2 * (lane1 == 2).astype(jnp.float32))
    row = lax.broadcasted_iota(jnp.int32, (_SUBLANES, _LANES), 0)
    out_ref[...] = ((row == 0).astype(jnp.float32) * inst_sim
                    + (row == 1).astype(jnp.float32) * cls_sim
                    + (row == 2).astype(jnp.float32) * cls_std
                    + (row == 3).astype(jnp.float32) * neg_row)


# --------------------------------------------------------------------------
# Wrapper
# --------------------------------------------------------------------------
@jax.jit
def instance_loss(views_1, views_2, labels, masks):
    """Pallas implementation of InstanceLoss.forward.

    views_1, views_2: (1, C, H, W) float; labels: (1, K) int; masks: (1, K, H, W) {0,1}.
    Returns (instance_sim[11], class_sim[11], neg_4wheel_human[1],
             neg_4wheel_2wheel[1], neg_human_2wheel[1], class_std[11]).
    """
    _, C, H, W = views_1.shape
    K = labels.shape[1]
    P = H * W

    K_pad = _round_up(max(K, 1), _SUBLANES)
    C_pad = _round_up(max(C, 1), _SUBLANES)

    # Two independent pixel halves -> "parallel" grid axis (v7x megacore);
    # harmless on single-TensorCore v5e / v6e.
    n_par = 2
    # Tile size on the pixel (lane) axis: budget ~6 MiB of VMEM per grid step
    # (double-buffered bf16 inputs + f32 temporaries) so it also fits v7x.
    per_lane_bytes = (K_pad + C_pad) * 2 * 2 * 2 + (2 * K_pad + C_pad + 2) * 4
    max_tile = max(_LANES, ((6 * 1024 * 1024) // per_lane_bytes) // _LANES * _LANES)
    tile_p = max(_LANES, min(max_tile, 8192,
                             _round_up(pl.cdiv(P, n_par), _LANES)))
    P_pad = _round_up(P, n_par * tile_p)
    n_tiles = P_pad // (n_par * tile_p)

    bf16 = jnp.bfloat16
    # One cast+pad per tensor, bf16 in HBM (masks {0,1} are exact in bf16).
    # No transposed duplicates are materialized.
    v1 = jnp.pad(views_1[0].reshape(C, P).astype(bf16),
                 ((0, C_pad - C), (0, P_pad - P)))
    v2 = jnp.pad(views_2[0].reshape(C, P).astype(bf16),
                 ((0, C_pad - C), (0, P_pad - P)))
    m = jnp.pad(masks[0].reshape(K, P).astype(bf16),
                ((0, K_pad - K), (0, P_pad - P)))
    lbl = jnp.pad(labels[0].astype(jnp.int32), (0, K_pad - K),
                  constant_values=-1)          # padded instances: class -1

    cparams = pltpu.CompilerParams(
        dimension_semantics=("parallel", "arbitrary"),
        vmem_limit_bytes=32 * 1024 * 1024)

    def tiled_spec(rows):
        return pl.BlockSpec((rows, tile_p), lambda p, t: (0, p * n_tiles + t))

    def acc_spec(cols):
        # Per-parallel-slice resident accumulator (same block across the
        # "arbitrary" pixel-tile axis); leading dim squeezed.
        return pl.BlockSpec((None, K_pad, cols), lambda p, t: (p, 0, 0))

    # ----------------- pass 1: per-instance stats from view1 ---------------
    cost1 = pl.CostEstimate(
        flops=int(2 * K_pad * C_pad * P_pad + 4 * (K_pad + C_pad) * P_pad),
        transcendentals=0,
        bytes_accessed=int((K_pad + C_pad) * P_pad * 2))
    s_parts, sq_parts, n_parts = pl.pallas_call(
        _stats_kernel,
        grid=(n_par, n_tiles),
        in_specs=[tiled_spec(K_pad), tiled_spec(C_pad)],
        out_specs=[acc_spec(C_pad), acc_spec(1), acc_spec(1)],
        out_shape=(jax.ShapeDtypeStruct((n_par, K_pad, C_pad), jnp.float32),
                   jax.ShapeDtypeStruct((n_par, K_pad, 1), jnp.float32),
                   jax.ShapeDtypeStruct((n_par, K_pad, 1), jnp.float32)),
        compiler_params=cparams,
        cost_estimate=cost1,
    )(m, v1)

    # Tiny wrapper glue: reduce the per-core partials and form means.
    s = jnp.sum(s_parts, axis=0)                       # (K_pad, C_pad)
    sq = jnp.sum(sq_parts, axis=0)                     # (K_pad, 1)
    n = jnp.sum(n_parts, axis=0)                       # (K_pad, 1)
    means = s / jnp.maximum(n, 1.0)                    # guard empty masks

    # ----------------- pass 2: cosine sims against view2 pixels ------------
    cost2 = pl.CostEstimate(
        flops=int(2 * K_pad * C_pad * P_pad + 2 * K_pad * K_pad * P_pad
                  + 6 * K_pad * P_pad),
        transcendentals=int(K_pad * P_pad),
        bytes_accessed=int((K_pad + C_pad) * P_pad * 2 + K_pad * C_pad * 4))
    sim_parts = pl.pallas_call(
        _simmat_kernel,
        grid=(n_par, n_tiles),
        in_specs=[pl.BlockSpec((K_pad, C_pad), lambda p, t: (0, 0)),
                  tiled_spec(K_pad), tiled_spec(C_pad)],
        out_specs=acc_spec(K_pad),
        out_shape=jax.ShapeDtypeStruct((n_par, K_pad, K_pad), jnp.float32),
        compiler_params=cparams,
        cost_estimate=cost2,
    )(means, m, v2)
    simraw = jnp.sum(sim_parts, axis=0)                # (K_pad, K_pad)

    # ----------------- pass 3: tiny finalize kernel -------------------------
    pst = jnp.concatenate([n, sq, jnp.sum(s, axis=1, keepdims=True)], axis=1)
    n_row = jnp.transpose(n)                           # (1, K_pad)
    cls_k1 = lbl.reshape(K_pad, 1)
    cls_1k = lbl.reshape(1, K_pad)

    def full_spec(shape):
        nd = len(shape)
        return pl.BlockSpec(shape, lambda i: (0,) * nd)

    packed = pl.pallas_call(
        functools.partial(_finalize_kernel, c_true=C),
        grid=(1,),
        in_specs=[full_spec((K_pad, K_pad)), full_spec((K_pad, 3)),
                  full_spec((1, K_pad)), full_spec((K_pad, 1)),
                  full_spec((1, K_pad))],
        out_specs=full_spec((_SUBLANES, _LANES)),
        out_shape=jax.ShapeDtypeStruct((_SUBLANES, _LANES), jnp.float32),
        compiler_params=pltpu.CompilerParams(dimension_semantics=("arbitrary",)),
    )(simraw, pst, n_row, cls_k1, cls_1k)

    return (packed[0, :NUM_CLASSES], packed[1, :NUM_CLASSES],
            packed[3, 0:1], packed[3, 1:2], packed[3, 2:3],
            packed[2, :NUM_CLASSES])


# --------------------------------------------------------------------------
# Pure numpy mirror of the PyTorch loop (intended semantics) for checking.
# --------------------------------------------------------------------------
def _reference(views_1, views_2, labels, masks):
    C = views_1.shape[1]
    K = labels.shape[1]
    v1 = views_1[0].reshape(C, -1)
    v2 = views_2[0].reshape(C, -1)
    m = masks[0].reshape(K, -1)
    cls = labels[0]
    instance_sim = np.zeros(NUM_CLASSES)
    class_sim = np.zeros(NUM_CLASSES)
    class_std = np.zeros(NUM_CLASSES)
    neg = np.zeros(3)
    cnt = np.zeros(3)
    inst1 = [v1[:, m[k] == 1].T for k in range(K)]
    inst2 = [v2[:, m[k] == 1].T for k in range(K)]

    def cos_mean(mean, pix):
        num = pix @ mean
        den = np.maximum(np.linalg.norm(mean) * np.linalg.norm(pix, axis=1), 1e-8)
        return float((num / den).mean())

    for i in range(K):
        mean = inst1[i].mean(axis=0)
        class_std[cls[i]] += inst1[i].std(ddof=1)
        for j in range(K):
            s = cos_mean(mean, inst2[j])
            if i == j:
                instance_sim[cls[i]] += s
            elif cls[i] == cls[j]:
                class_sim[cls[i]] += s
            else:
                ci, cj = int(cls[i]), int(cls[j])
                if (ci in range(1, 3) or ci in range(3, 9)) and \
                   (cj in range(3, 9) or cj in range(1, 3)):
                    cnt[0] += 1; neg[0] += s
                if (ci in range(9, 11) or ci in range(3, 9)) and \
                   (cj in range(3, 9) or cj in range(9, 11)):
                    cnt[1] += 1; neg[1] += s
                if (ci in range(1, 3) or ci in range(9, 11)) and \
                   (cj in range(9, 11) or cj in range(1, 3)):
                    cnt[2] += 1; neg[2] += s
    for t in range(3):
        if cnt[t] > 1:
            neg[t] /= cnt[t]
    for c in np.unique(cls):
        cs = int((cls == c).sum())
        if cs > 1:
            instance_sim[c] /= cs
            class_sim[c] /= cs * (cs - 1)
            class_std[c] /= cs
    return (instance_sim, class_sim, neg[0:1], neg[1:2], neg[2:3], class_std)


if __name__ == "__main__":
    key = jax.random.PRNGKey(0)
    C, H, W, K = 8, 16, 16, 4
    P = H * W
    k1, k2, k3 = jax.random.split(key, 3)

    views_1 = jax.random.normal(k1, (1, C, H, W), dtype=jnp.float32)
    views_2 = jax.random.normal(k2, (1, C, H, W), dtype=jnp.float32)

    # Each pixel belongs to exactly one of K instances; force the first K
    # pixels to cover every instance so no instance is empty.
    pix_owner = jax.random.randint(k3, (P,), 0, K)
    pix_owner = pix_owner.at[:K].set(jnp.arange(K))
    masks = jax.nn.one_hot(pix_owner, K, dtype=jnp.float32).T.reshape(1, K, H, W)

    # Two "human"-range instances (class 1), one "4wheel" (4), one "2wheel" (9).
    labels = jnp.array([[1, 1, 4, 9]], dtype=jnp.int32)

    outs = instance_loss(views_1, views_2, labels, masks)
    outs = jax.block_until_ready(outs)

    ref = _reference(np.asarray(views_1), np.asarray(views_2),
                     np.asarray(labels), np.asarray(masks))
    # bf16 input quantization -> slightly looser tolerance than pure f32.
    for got, want in zip(outs, ref):
        np.testing.assert_allclose(np.asarray(got), want, rtol=3e-2, atol=3e-2)

    print("KERNEL_OK")
</pallas_src>

<mosaic_0001>
module attributes {stable_mosaic.version = 11 : i64} {
  func.func @_stats_kernel(%arg0: i32, %arg1: i32, %arg2: memref<8x128xbf16, #tpu.memory_space<vmem>>, %arg3: memref<8x128xbf16, #tpu.memory_space<vmem>>, %arg4: memref<1x8x8xf32, #tpu.memory_space<vmem>>, %arg5: memref<1x8x1xf32, #tpu.memory_space<vmem>>, %arg6: memref<1x8x1xf32, #tpu.memory_space<vmem>>) attributes {dimension_semantics = [#tpu.dimension_semantics<parallel>, #tpu.dimension_semantics<arbitrary>], iteration_bounds = array<i64: 2, 1>, scalar_prefetch = 0 : i64, scratch_operands = 0 : i64, tpu.core_type = #tpu.core_type<tc>, window_params = [{transform_indices = @transform_0, window_bounds = array<i64: 8, 128>}, {transform_indices = @transform_1, window_bounds = array<i64: 8, 128>}, {transform_indices = @transform_2, window_bounds = array<i64: 1, 8, 8>}, {transform_indices = @transform_3, window_bounds = array<i64: 1, 8, 1>}, {transform_indices = @transform_4, window_bounds = array<i64: 1, 8, 1>}]} {
    %c0_i32 = arith.constant 0 : i32
    %0 = arith.cmpi eq, %arg1, %c0_i32 : i32
    %1 = arith.extui %0 : i1 to i32
    %c0_i32_0 = arith.constant 0 : i32
    %2 = arith.cmpi ne, %1, %c0_i32_0 : i32
    scf.if %2 {
      %cst_25 = arith.constant 0.000000e+00 : f32
      %35 = vector.broadcast %cst_25 : f32 to vector<8x8xf32>
      %c0_26 = arith.constant 0 : index
      %c0_27 = arith.constant 0 : index
      %c0_28 = arith.constant 0 : index
      %36 = vector.load %arg4[%c0_26, %c0_27, %c0_28] : memref<1x8x8xf32, #tpu.memory_space<vmem>>, vector<1x8x8xf32>
      %37 = vector.shape_cast %36 : vector<1x8x8xf32> to vector<8x8xf32>
      %38 = vector.shape_cast %35 : vector<8x8xf32> to vector<1x8x8xf32>
      tpu.vector_store %arg4[%c0_26, %c0_27, %c0_28], %38 {strides = array<i32>} : memref<1x8x8xf32, #tpu.memory_space<vmem>>, vector<1x8x8xf32>,
      %cst_29 = arith.constant 0.000000e+00 : f32
      %39 = vector.broadcast %cst_29 : f32 to vector<8x1xf32>
      %c0_30 = arith.constant 0 : index
      %c0_31 = arith.constant 0 : index
      %c0_32 = arith.constant 0 : index
      %40 = vector.load %arg5[%c0_30, %c0_31, %c0_32] : memref<1x8x1xf32, #tpu.memory_space<vmem>>, vector<1x8x1xf32>
      %41 = vector.shape_cast %40 : vector<1x8x1xf32> to vector<8x1xf32>
      %42 = vector.shape_cast %39 : vector<8x1xf32> to vector<1x8x1xf32>
      tpu.vector_store %arg5[%c0_30, %c0_31, %c0_32], %42 {strides = array<i32>} : memref<1x8x1xf32, #tpu.memory_space<vmem>>, vector<1x8x1xf32>,
      %cst_33 = arith.constant 0.000000e+00 : f32
      %43 = vector.broadcast %cst_33 : f32 to vector<8x1xf32>
      %c0_34 = arith.constant 0 : index
      %c0_35 = arith.constant 0 : index
      %c0_36 = arith.constant 0 : index
      %44 = vector.load %arg6[%c0_34, %c0_35, %c0_36] : memref<1x8x1xf32, #tpu.memory_space<vmem>>, vector<1x8x1xf32>
      %45 = vector.shape_cast %44 : vector<1x8x1xf32> to vector<8x1xf32>
      %46 = vector.shape_cast %43 : vector<8x1xf32> to vector<1x8x1xf32>
      tpu.vector_store %arg6[%c0_34, %c0_35, %c0_36], %46 {strides = array<i32>} : memref<1x8x1xf32, #tpu.memory_space<vmem>>, vector<1x8x1xf32>,
    } else {
    }
    %c0 = arith.constant 0 : index
    %c0_1 = arith.constant 0 : index
    %3 = vector.load %arg2[%c0, %c0_1] : memref<8x128xbf16, #tpu.memory_space<vmem>>, vector<8x128xbf16>
    %4 = arith.extf %3 : vector<8x128xbf16> to vector<8x128xf32>
    %c0_2 = arith.constant 0 : index
    %c0_3 = arith.constant 0 : index
    %5 = vector.load %arg3[%c0_2, %c0_3] : memref<8x128xbf16, #tpu.memory_space<vmem>>, vector<8x128xbf16>
    %6 = arith.extf %5 : vector<8x128xbf16> to vector<8x128xf32>
    %c0_4 = arith.constant 0 : index
    %c0_5 = arith.constant 0 : index
    %c0_6 = arith.constant 0 : index
    %7 = vector.load %arg4[%c0_4, %c0_5, %c0_6] : memref<1x8x8xf32, #tpu.memory_space<vmem>>, vector<1x8x8xf32>
    %8 = vector.shape_cast %7 : vector<1x8x8xf32> to vector<8x8xf32>
    %cst = arith.constant dense<0.000000e+00> : vector<8x8xf32>
    %9 = tpu.matmul %4, %6, %cst {dimension_numbers = #tpu.dot_dimension_numbers<[1], [1], [0], [0], [0, 0, 1, 0], [], []>} : vector<8x128xf32>, vector<8x128xf32>, vector<8x8xf32> -> vector<8x8xf32>
    %10 = arith.addf %8, %9 : vector<8x8xf32>
    %c0_7 = arith.constant 0 : index
    %c0_8 = arith.constant 0 : index
    %c0_9 = arith.constant 0 : index
    %11 = vector.load %arg4[%c0_7, %c0_8, %c0_9] : memref<1x8x8xf32, #tpu.memory_space<vmem>>, vector<1x8x8xf32>
    %12 = vector.shape_cast %11 : vector<1x8x8xf32> to vector<8x8xf32>
    %13 = vector.shape_cast %10 : vector<8x8xf32> to vector<1x8x8xf32>
    tpu.vector_store %arg4[%c0_7, %c0_8, %c0_9], %13 {strides = array<i32>} : memref<1x8x8xf32, #tpu.memory_space<vmem>>, vector<1x8x8xf32>,
    %14 = arith.mulf %6, %6 : vector<8x128xf32>
    %cst_10 = arith.constant dense<0.000000e+00> : vector<128xf32>
    %15 = vector.multi_reduction <add>, %14, %cst_10 [0] : vector<8x128xf32> to vector<128xf32>
    %16 = vector.shape_cast %15 : vector<128xf32> to vector<1x128xf32>
    %c0_11 = arith.constant 0 : index
    %c0_12 = arith.constant 0 : index
    %c0_13 = arith.constant 0 : index
    %17 = vector.load %arg5[%c0_11, %c0_12, %c0_13] : memref<1x8x1xf32, #tpu.memory_space<vmem>>, vector<1x8x1xf32>
    %18 = vector.shape_cast %17 : vector<1x8x1xf32> to vector<8x1xf32>
    %19 = vector.broadcast %16 : vector<1x128xf32> to vector<8x128xf32>
    %20 = arith.mulf %4, %19 : vector<8x128xf32>
    %cst_14 = arith.constant dense<0.000000e+00> : vector<8xf32>
    %21 = vector.multi_reduction <add>, %20, %cst_14 [1] : vector<8x128xf32> to vector<8xf32>
    %22 = vector.shape_cast %21 : vector<8xf32> to vector<8x1xf32>
    %23 = arith.addf %18, %22 : vector<8x1xf32>
    %c0_15 = arith.constant 0 : index
    %c0_16 = arith.constant 0 : index
    %c0_17 = arith.constant 0 : index
    %24 = vector.load %arg5[%c0_15, %c0_16, %c0_17] : memref<1x8x1xf32, #tpu.memory_space<vmem>>, vector<1x8x1xf32>
    %25 = vector.shape_cast %24 : vector<1x8x1xf32> to vector<8x1xf32>
    %26 = vector.shape_cast %23 : vector<8x1xf32> to vector<1x8x1xf32>
    tpu.vector_store %arg5[%c0_15, %c0_16, %c0_17], %26 {strides = array<i32>} : memref<1x8x1xf32, #tpu.memory_space<vmem>>, vector<1x8x1xf32>,
    %c0_18 = arith.constant 0 : index
    %c0_19 = arith.constant 0 : index
    %c0_20 = arith.constant 0 : index
    %27 = vector.load %arg6[%c0_18, %c0_19, %c0_20] : memref<1x8x1xf32, #tpu.memory_space<vmem>>, vector<1x8x1xf32>
    %28 = vector.shape_cast %27 : vector<1x8x1xf32> to vector<8x1xf32>
    %cst_21 = arith.constant dense<0.000000e+00> : vector<8xf32>
    %29 = vector.multi_reduction <add>, %4, %cst_21 [1] : vector<8x128xf32> to vector<8xf32>
    %30 = vector.shape_cast %29 : vector<8xf32> to vector<8x1xf32>
    %31 = arith.addf %28, %30 : vector<8x1xf32>
    %c0_22 = arith.constant 0 : index
    %c0_23 = arith.constant 0 : index
    %c0_24 = arith.constant 0 : index
    %32 = vector.load %arg6[%c0_22, %c0_23, %c0_24] : memref<1x8x1xf32, #tpu.memory_space<vmem>>, vector<1x8x1xf32>
    %33 = vector.shape_cast %32 : vector<1x8x1xf32> to vector<8x1xf32>
    %34 = vector.shape_cast %31 : vector<8x1xf32> to vector<1x8x1xf32>
    tpu.vector_store %arg6[%c0_22, %c0_23, %c0_24], %34 {strides = array<i32>} : memref<1x8x1xf32, #tpu.memory_space<vmem>>, vector<1x8x1xf32>,
    return
  }
  func.func @transform_0(%arg0: i32, %arg1: i32) -> (i32, i32) {
    %c1_i32 = arith.constant 1 : i32
    %0 = arith.muli %arg0, %c1_i32 : i32
    %1 = arith.addi %0, %arg1 : i32
    %c0_i32 = arith.constant 0 : i32
    %c0_i32_0 = arith.constant 0 : i32
    return %c0_i32, %1 : i32, i32
  }
  func.func @transform_1(%arg0: i32, %arg1: i32) -> (i32, i32) {
    %c1_i32 = arith.constant 1 : i32
    %0 = arith.muli %arg0, %c1_i32 : i32
    %1 = arith.addi %0, %arg1 : i32
    %c0_i32 = arith.constant 0 : i32
    %c0_i32_0 = arith.constant 0 : i32
    return %c0_i32, %1 : i32, i32
  }
  func.func @transform_2(%arg0: i32, %arg1: i32) -> (i32, i32, i32) {
    %c0_i32 = arith.constant 0 : i32
    %c0_i32_0 = arith.constant 0 : i32
    %c0_i32_1 = arith.constant 0 : i32
    return %arg0, %c0_i32, %c0_i32_0 : i32, i32, i32
  }
  func.func @transform_3(%arg0: i32, %arg1: i32) -> (i32, i32, i32) {
    %c0_i32 = arith.constant 0 : i32
    %c0_i32_0 = arith.constant 0 : i32
    %c0_i32_1 = arith.constant 0 : i32
    return %arg0, %c0_i32, %c0_i32_0 : i32, i32, i32
  }
  func.func @transform_4(%arg0: i32, %arg1: i32) -> (i32, i32, i32) {
    %c0_i32 = arith.constant 0 : i32
    %c0_i32_0 = arith.constant 0 : i32
    %c0_i32_1 = arith.constant 0 : i32
    return %arg0, %c0_i32, %c0_i32_0 : i32, i32, i32
  }
}

module attributes {stable_mosaic.version = 11 : i64} {
  func.func @_simmat_kernel(%arg0: i32, %arg1: i32, %arg2: memref<8x8xf32, #tpu.memory_space<vmem>>, %arg3: memref<8x128xbf16, #tpu.memory_space<vmem>>, %arg4: memref<8x128xbf16, #tpu.memory_space<vmem>>, %arg5: memref<1x8x8xf32, #tpu.memory_space<vmem>>) attributes {dimension_semantics = [#tpu.dimension_semantics<parallel>, #tpu.dimension_semantics<arbitrary>], iteration_bounds = array<i64: 2, 1>, scalar_prefetch = 0 : i64, scratch_operands = 0 : i64, tpu.core_type = #tpu.core_type<tc>, window_params = [{pipeline_mode = #tpu.pipeline_mode<synchronous>, transform_indices = @transform_0, window_bounds = array<i64: 8, 8>}, {transform_indices = @transform_1, window_bounds = array<i64: 8, 128>}, {transform_indices = @transform_2, window_bounds = array<i64: 8, 128>}, {transform_indices = @transform_3, window_bounds = array<i64: 1, 8, 8>}]} {
    %c0_i32 = arith.constant 0 : i32
    %0 = arith.cmpi eq, %arg1, %c0_i32 : i32
    %1 = arith.extui %0 : i1 to i32
    %c0_i32_0 = arith.constant 0 : i32
    %2 = arith.cmpi ne, %1, %c0_i32_0 : i32
    scf.if %2 {
      %cst_16 = arith.constant 0.000000e+00 : f32
      %29 = vector.broadcast %cst_16 : f32 to vector<8x8xf32>
      %c0_17 = arith.constant 0 : index
      %c0_18 = arith.constant 0 : index
      %c0_19 = arith.constant 0 : index
      %30 = vector.load %arg5[%c0_17, %c0_18, %c0_19] : memref<1x8x8xf32, #tpu.memory_space<vmem>>, vector<1x8x8xf32>
      %31 = vector.shape_cast %30 : vector<1x8x8xf32> to vector<8x8xf32>
      %32 = vector.shape_cast %29 : vector<8x8xf32> to vector<1x8x8xf32>
      tpu.vector_store %arg5[%c0_17, %c0_18, %c0_19], %32 {strides = array<i32>} : memref<1x8x8xf32, #tpu.memory_space<vmem>>, vector<1x8x8xf32>,
    } else {
    }
    %c0 = arith.constant 0 : index
    %c0_1 = arith.constant 0 : index
    %3 = vector.load %arg2[%c0, %c0_1] : memref<8x8xf32, #tpu.memory_space<vmem>>, vector<8x8xf32>
    %c0_2 = arith.constant 0 : index
    %c0_3 = arith.constant 0 : index
    %4 = vector.load %arg3[%c0_2, %c0_3] : memref<8x128xbf16, #tpu.memory_space<vmem>>, vector<8x128xbf16>
    %5 = arith.extf %4 : vector<8x128xbf16> to vector<8x128xf32>
    %c0_4 = arith.constant 0 : index
    %c0_5 = arith.constant 0 : index
    %6 = vector.load %arg4[%c0_4, %c0_5] : memref<8x128xbf16, #tpu.memory_space<vmem>>, vector<8x128xbf16>
    %7 = arith.extf %6 : vector<8x128xbf16> to vector<8x128xf32>
    %cst = arith.constant dense<0.000000e+00> : vector<8x128xf32>
    %8 = tpu.matmul %3, %7, %cst {dimension_numbers = #tpu.dot_dimension_numbers<[1], [0], [0], [1], [0, 0, 1, 1], [], []>} : vector<8x8xf32>, vector<8x128xf32>, vector<8x128xf32> -> vector<8x128xf32>
    %9 = arith.mulf %3, %3 : vector<8x8xf32>
    %cst_6 = arith.constant dense<0.000000e+00> : vector<8xf32>
    %10 = vector.multi_reduction <add>, %9, %cst_6 [1] : vector<8x8xf32> to vector<8xf32>
    %11 = vector.shape_cast %10 : vector<8xf32> to vector<8x1xf32>
    %12 = arith.mulf %7, %7 : vector<8x128xf32>
    %cst_7 = arith.constant dense<0.000000e+00> : vector<128xf32>
    %13 = vector.multi_reduction <add>, %12, %cst_7 [0] : vector<8x128xf32> to vector<128xf32>
    %14 = vector.shape_cast %13 : vector<128xf32> to vector<1x128xf32>
    %15 = vector.broadcast %11 : vector<8x1xf32> to vector<8x128xf32>
    %16 = vector.broadcast %14 : vector<1x128xf32> to vector<8x128xf32>
    %17 = arith.mulf %15, %16 : vector<8x128xf32>
    %cst_8 = arith.constant 1.000000e-16 : f32
    %18 = vector.broadcast %cst_8 : f32 to vector<8x128xf32>
    %19 = arith.maximumf %17, %18 : vector<8x128xf32>
    %20 = math.rsqrt %19 : vector<8x128xf32>
    %21 = arith.mulf %8, %20 : vector<8x128xf32>
    %c0_9 = arith.constant 0 : index
    %c0_10 = arith.constant 0 : index
    %c0_11 = arith.constant 0 : index
    %22 = vector.load %arg5[%c0_9, %c0_10, %c0_11] : memref<1x8x8xf32, #tpu.memory_space<vmem>>, vector<1x8x8xf32>
    %23 = vector.shape_cast %22 : vector<1x8x8xf32> to vector<8x8xf32>
    %cst_12 = arith.constant dense<0.000000e+00> : vector<8x8xf32>
    %24 = tpu.matmul %21, %5, %cst_12 {dimension_numbers = #tpu.dot_dimension_numbers<[1], [1], [0], [0], [0, 0, 1, 0], [], []>} : vector<8x128xf32>, vector<8x128xf32>, vector<8x8xf32> -> vector<8x8xf32>
    %25 = arith.addf %23, %24 : vector<8x8xf32>
    %c0_13 = arith.constant 0 : index
    %c0_14 = arith.constant 0 : index
    %c0_15 = arith.constant 0 : index
    %26 = vector.load %arg5[%c0_13, %c0_14, %c0_15] : memref<1x8x8xf32, #tpu.memory_space<vmem>>, vector<1x8x8xf32>
    %27 = vector.shape_cast %26 : vector<1x8x8xf32> to vector<8x8xf32>
    %28 = vector.shape_cast %25 : vector<8x8xf32> to vector<1x8x8xf32>
    tpu.vector_store %arg5[%c0_13, %c0_14, %c0_15], %28 {strides = array<i32>} : memref<1x8x8xf32, #tpu.memory_space<vmem>>, vector<1x8x8xf32>,
    return
  }
  func.func @transform_0(%arg0: i32, %arg1: i32) -> (i32, i32) {
    %c0_i32 = arith.constant 0 : i32
    %c0_i32_0 = arith.constant 0 : i32
    %c0_i32_1 = arith.constant 0 : i32
    return %c0_i32, %c0_i32_0 : i32, i32
  }
  func.func @transform_1(%arg0: i32, %arg1: i32) -> (i32, i32) {
    %c1_i32 = arith.constant 1 : i32
    %0 = arith.muli %arg0, %c1_i32 : i32
    %1 = arith.addi %0, %arg1 : i32
    %c0_i32 = arith.constant 0 : i32
    %c0_i32_0 = arith.constant 0 : i32
    return %c0_i32, %1 : i32, i32
  }
  func.func @transform_2(%arg0: i32, %arg1: i32) -> (i32, i32) {
    %c1_i32 = arith.constant 1 : i32
    %0 = arith.muli %arg0, %c1_i32 : i32
    %1 = arith.addi %0, %arg1 : i32
    %c0_i32 = arith.constant 0 : i32
    %c0_i32_0 = arith.constant 0 : i32
    return %c0_i32, %1 : i32, i32
  }
  func.func @transform_3(%arg0: i32, %arg1: i32) -> (i32, i32, i32) {
    %c0_i32 = arith.constant 0 : i32
    %c0_i32_0 = arith.constant 0 : i32
    %c0_i32_1 = arith.constant 0 : i32
    return %arg0, %c0_i32, %c0_i32_0 : i32, i32, i32
  }
}

module attributes {stable_mosaic.version = 11 : i64} {
  func.func @_finalize_kernel(%arg0: i32, %arg1: memref<8x8xf32, #tpu.memory_space<vmem>>, %arg2: memref<8x3xf32, #tpu.memory_space<vmem>>, %arg3: memref<1x8xf32, #tpu.memory_space<vmem>>, %arg4: memref<8x1xi32, #tpu.memory_space<vmem>>, %arg5: memref<1x8xi32, #tpu.memory_space<vmem>>, %arg6: memref<8x128xf32, #tpu.memory_space<vmem>>) attributes {dimension_semantics = [#tpu.dimension_semantics<arbitrary>], iteration_bounds = array<i64: 1>, scalar_prefetch = 0 : i64, scratch_operands = 0 : i64, tpu.core_type = #tpu.core_type<tc>, window_params = [{pipeline_mode = #tpu.pipeline_mode<synchronous>, transform_indices = @transform_0, window_bounds = array<i64: 8, 8>}, {pipeline_mode = #tpu.pipeline_mode<synchronous>, transform_indices = @transform_1, window_bounds = array<i64: 8, 3>}, {pipeline_mode = #tpu.pipeline_mode<synchronous>, transform_indices = @transform_2, window_bounds = array<i64: 1, 8>}, {pipeline_mode = #tpu.pipeline_mode<synchronous>, transform_indices = @transform_3, window_bounds = array<i64: 8, 1>}, {pipeline_mode = #tpu.pipeline_mode<synchronous>, transform_indices = @transform_4, window_bounds = array<i64: 1, 8>}, {pipeline_mode = #tpu.pipeline_mode<synchronous>, transform_indices = @transform_5, window_bounds = array<i64: 8, 128>}]} {
    %c0 = arith.constant 0 : index
    %c0_0 = arith.constant 0 : index
    %0 = vector.load %arg1[%c0, %c0_0] : memref<8x8xf32, #tpu.memory_space<vmem>>, vector<8x8xf32>
    %c0_1 = arith.constant 0 : index
    %c0_2 = arith.constant 0 : index
    %1 = vector.load %arg2[%c0_1, %c0_2] : memref<8x3xf32, #tpu.memory_space<vmem>>, vector<8x3xf32>
    %2 = vector.extract_strided_slice %1 {offsets = [0, 0], sizes = [8, 1], strides = [1, 1]} : vector<8x3xf32> to vector<8x1xf32>
    %3 = vector.extract_strided_slice %1 {offsets = [0, 1], sizes = [8, 1], strides = [1, 1]} : vector<8x3xf32> to vector<8x1xf32>
    %4 = vector.extract_strided_slice %1 {offsets = [0, 2], sizes = [8, 1], strides = [1, 1]} : vector<8x3xf32> to vector<8x1xf32>
    %c0_3 = arith.constant 0 : index
    %c0_4 = arith.constant 0 : index
    %5 = vector.load %arg3[%c0_3, %c0_4] : memref<1x8xf32, #tpu.memory_space<vmem>>, vector<1x8xf32>
    %c0_5 = arith.constant 0 : index
    %c0_6 = arith.constant 0 : index
    %6 = vector.load %arg4[%c0_5, %c0_6] : memref<8x1xi32, #tpu.memory_space<vmem>>, vector<8x1xi32>
    %c0_7 = arith.constant 0 : index
    %c0_8 = arith.constant 0 : index
    %7 = vector.load %arg5[%c0_7, %c0_8] : memref<1x8xi32, #tpu.memory_space<vmem>>, vector<1x8xi32>
    %cst = arith.constant 1.000000e+00 : f32
    %8 = vector.broadcast %cst : f32 to vector<1x8xf32>
    %9 = arith.maximumf %5, %8 : vector<1x8xf32>
    %10 = vector.broadcast %9 : vector<1x8xf32> to vector<8x8xf32>
    %11 = arith.divf %0, %10 : vector<8x8xf32>
    %cst_9 = arith.constant 8.000000e+00 : f32
    %12 = vector.broadcast %cst_9 : f32 to vector<8x1xf32>
    %13 = arith.mulf %2, %12 : vector<8x1xf32>
    %14 = arith.mulf %4, %4 : vector<8x1xf32>
    %cst_10 = arith.constant 1.000000e+00 : f32
    %15 = vector.broadcast %cst_10 : f32 to vector<8x1xf32>
    %16 = arith.maximumf %13, %15 : vector<8x1xf32>
    %17 = arith.divf %14, %16 : vector<8x1xf32>
    %18 = arith.subf %3, %17 : vector<8x1xf32>
    %cst_11 = arith.constant 1.000000e+00 : f32
    %19 = vector.broadcast %cst_11 : f32 to vector<8x1xf32>
    %20 = arith.subf %13, %19 : vector<8x1xf32>
    %cst_12 = arith.constant 1.000000e+00 : f32
    %21 = vector.broadcast %cst_12 : f32 to vector<8x1xf32>
    %22 = arith.maximumf %20, %21 : vector<8x1xf32>
    %23 = arith.divf %18, %22 : vector<8x1xf32>
    %cst_13 = arith.constant 0.000000e+00 : f32
    %24 = vector.broadcast %cst_13 : f32 to vector<8x1xf32>
    %25 = arith.maximumf %23, %24 : vector<8x1xf32>
    %26 = math.sqrt %25 : vector<8x1xf32>
    %27 = tpu.iota {dimensions = array<i32: 0>} : vector<8x8xi32>
    %28 = tpu.iota {dimensions = array<i32: 1>} : vector<8x8xi32>
    %29 = arith.cmpi eq, %27, %28 : vector<8x8xi32>
    %30 = arith.extui %29 : vector<8x8xi1> to vector<8x8xi32>
    %31 = arith.sitofp %30 : vector<8x8xi32> to vector<8x8xf32>
    %32 = vector.broadcast %6 : vector<8x1xi32> to vector<8x8xi32>
    %33 = vector.broadcast %7 : vector<1x8xi32> to vector<8x8xi32>
    %34 = arith.cmpi eq, %32, %33 : vector<8x8xi32>
    %35 = arith.extui %34 : vector<8x8xi1> to vector<8x8xi32>
    %36 = arith.sitofp %35 : vector<8x8xi32> to vector<8x8xf32>
    %cst_14 = arith.constant 1.000000e+00 : f32
    %37 = vector.broadcast %cst_14 : f32 to vector<8x8xf32>
    %38 = arith.subf %37, %36 : vector<8x8xf32>
    %39 = arith.mulf %11, %31 : vector<8x8xf32>
    %cst_15 = arith.constant dense<0.000000e+00> : vector<8xf32>
    %40 = vector.multi_reduction <add>, %39, %cst_15 [1] : vector<8x8xf32> to vector<8xf32>
    %41 = vector.shape_cast %40 : vector<8xf32> to vector<8x1xf32>
    %42 = arith.mulf %11, %36 : vector<8x8xf32>
    %cst_16 = arith.constant 1.000000e+00 : f32
    %43 = vector.broadcast %cst_16 : f32 to vector<8x8xf32>
    %44 = arith.subf %43, %31 : vector<8x8xf32>
    %45 = arith.mulf %42, %44 : vector<8x8xf32>
    %cst_17 = arith.constant dense<0.000000e+00> : vector<8xf32>
    %46 = vector.multi_reduction <add>, %45, %cst_17 [1] : vector<8x8xf32> to vector<8xf32>
    %47 = vector.shape_cast %46 : vector<8xf32> to vector<8x1xf32>
    %48 = tpu.iota {dimensions = array<i32: 1>} : vector<8x128xi32>
    %49 = vector.broadcast %6 : vector<8x1xi32> to vector<8x128xi32>
    %50 = arith.cmpi eq, %49, %48 : vector<8x128xi32>
    %51 = arith.extui %50 : vector<8x128xi1> to vector<8x128xi32>
    %52 = arith.sitofp %51 : vector<8x128xi32> to vector<8x128xf32>
    %cst_18 = arith.constant dense<0.000000e+00> : vector<128xf32>
    %53 = vector.multi_reduction <add>, %52, %cst_18 [0] : vector<8x128xf32> to vector<128xf32>
    %54 = vector.shape_cast %53 : vector<128xf32> to vector<1x128xf32>
    %55 = vector.broadcast %41 : vector<8x1xf32> to vector<8x128xf32>
    %56 = arith.mulf %52, %55 : vector<8x128xf32>
    %cst_19 = arith.constant dense<0.000000e+00> : vector<128xf32>
    %57 = vector.multi_reduction <add>, %56, %cst_19 [0] : vector<8x128xf32> to vector<128xf32>
    %58 = vector.shape_cast %57 : vector<128xf32> to vector<1x128xf32>
    %59 = vector.broadcast %47 : vector<8x1xf32> to vector<8x128xf32>
    %60 = arith.mulf %52, %59 : vector<8x128xf32>
    %cst_20 = arith.constant dense<0.000000e+00> : vector<128xf32>
    %61 = vector.multi_reduction <add>, %60, %cst_20 [0] : vector<8x128xf32> to vector<128xf32>
    %62 = vector.shape_cast %61 : vector<128xf32> to vector<1x128xf32>
    %63 = vector.broadcast %26 : vector<8x1xf32> to vector<8x128xf32>
    %64 = arith.mulf %52, %63 : vector<8x128xf32>
    %cst_21 = arith.constant dense<0.000000e+00> : vector<128xf32>
    %65 = vector.multi_reduction <add>, %64, %cst_21 [0] : vector<8x128xf32> to vector<128xf32>
    %66 = vector.shape_cast %65 : vector<128xf32> to vector<1x128xf32>
    %cst_22 = arith.constant 1.000000e+00 : f32
    %67 = vector.broadcast %cst_22 : f32 to vector<1x128xf32>
    %68 = arith.cmpf ogt, %54, %67 : vector<1x128xf32>
    %cst_23 = arith.constant 1.000000e+00 : f32
    %69 = vector.broadcast %cst_23 : f32 to vector<1x128xf32>
    %70 = arith.maximumf %54, %69 : vector<1x128xf32>
    %cst_24 = arith.constant 1.000000e+00 : f32
    %71 = vector.broadcast %cst_24 : f32 to vector<1x128xf32>
    %72 = arith.subf %54, %71 : vector<1x128xf32>
    %cst_25 = arith.constant 1.000000e+00 : f32
    %73 = vector.broadcast %cst_25 : f32 to vector<1x128xf32>
    %74 = arith.maximumf %72, %73 : vector<1x128xf32>
    %75 = arith.divf %58, %70 : vector<1x128xf32>
    %76 = arith.select %68, %75, %58 : vector<1x128xi1>, vector<1x128xf32>
    %77 = arith.mulf %70, %74 : vector<1x128xf32>
    %78 = arith.divf %62, %77 : vector<1x128xf32>
    %79 = arith.select %68, %78, %62 : vector<1x128xi1>, vector<1x128xf32>
    %80 = arith.divf %66, %70 : vector<1x128xf32>
    %81 = arith.select %68, %80, %66 : vector<1x128xi1>, vector<1x128xf32>
    %c1_i32 = arith.constant 1 : i32
    %82 = vector.broadcast %c1_i32 : i32 to vector<8x1xi32>
    %83 = arith.cmpi sge, %6, %82 : vector<8x1xi32>
    %c3_i32 = arith.constant 3 : i32
    %84 = vector.broadcast %c3_i32 : i32 to vector<8x1xi32>
    %85 = arith.cmpi slt, %6, %84 : vector<8x1xi32>
    %86 = arith.andi %83, %85 : vector<8x1xi1>
    %87 = arith.extui %86 : vector<8x1xi1> to vector<8x1xi32>
    %88 = arith.sitofp %87 : vector<8x1xi32> to vector<8x1xf32>
    %c1_i32_26 = arith.constant 1 : i32
    %89 = vector.broadcast %c1_i32_26 : i32 to vector<1x8xi32>
    %90 = arith.cmpi sge, %7, %89 : vector<1x8xi32>
    %c3_i32_27 = arith.constant 3 : i32
    %91 = vector.broadcast %c3_i32_27 : i32 to vector<1x8xi32>
    %92 = arith.cmpi slt, %7, %91 : vector<1x8xi32>
    %93 = arith.andi %90, %92 : vector<1x8xi1>
    %94 = arith.extui %93 : vector<1x8xi1> to vector<1x8xi32>
    %95 = arith.sitofp %94 : vector<1x8xi32> to vector<1x8xf32>
    %c3_i32_28 = arith.constant 3 : i32
    %96 = vector.broadcast %c3_i32_28 : i32 to vector<8x1xi32>
    %97 = arith.cmpi sge, %6, %96 : vector<8x1xi32>
    %c9_i32 = arith.constant 9 : i32
    %98 = vector.broadcast %c9_i32 : i32 to vector<8x1xi32>
    %99 = arith.cmpi slt, %6, %98 : vector<8x1xi32>
    %100 = arith.andi %97, %99 : vector<8x1xi1>
    %101 = arith.extui %100 : vector<8x1xi1> to vector<8x1xi32>
    %102 = arith.sitofp %101 : vector<8x1xi32> to vector<8x1xf32>
    %c3_i32_29 = arith.constant 3 : i32
    %103 = vector.broadcast %c3_i32_29 : i32 to vector<1x8xi32>
    %104 = arith.cmpi sge, %7, %103 : vector<1x8xi32>
    %c9_i32_30 = arith.constant 9 : i32
    %105 = vector.broadcast %c9_i32_30 : i32 to vector<1x8xi32>
    %106 = arith.cmpi slt, %7, %105 : vector<1x8xi32>
    %107 = arith.andi %104, %106 : vector<1x8xi1>
    %108 = arith.extui %107 : vector<1x8xi1> to vector<1x8xi32>
    %109 = arith.sitofp %108 : vector<1x8xi32> to vector<1x8xf32>
    %c9_i32_31 = arith.constant 9 : i32
    %110 = vector.broadcast %c9_i32_31 : i32 to vector<8x1xi32>
    %111 = arith.cmpi sge, %6, %110 : vector<8x1xi32>
    %c11_i32 = arith.constant 11 : i32
    %112 = vector.broadcast %c11_i32 : i32 to vector<8x1xi32>
    %113 = arith.cmpi slt, %6, %112 : vector<8x1xi32>
    %114 = arith.andi %111, %113 : vector<8x1xi1>
    %115 = arith.extui %114 : vector<8x1xi1> to vector<8x1xi32>
    %116 = arith.sitofp %115 : vector<8x1xi32> to vector<8x1xf32>
    %c9_i32_32 = arith.constant 9 : i32
    %117 = vector.broadcast %c9_i32_32 : i32 to vector<1x8xi32>
    %118 = arith.cmpi sge, %7, %117 : vector<1x8xi32>
    %c11_i32_33 = arith.constant 11 : i32
    %119 = vector.broadcast %c11_i32_33 : i32 to vector<1x8xi32>
    %120 = arith.cmpi slt, %7, %119 : vector<1x8xi32>
    %121 = arith.andi %118, %120 : vector<1x8xi1>
    %122 = arith.extui %121 : vector<1x8xi1> to vector<1x8xi32>
    %123 = arith.sitofp %122 : vector<1x8xi32> to vector<1x8xf32>
    %124 = arith.addf %88, %102 : vector<8x1xf32>
    %125 = arith.addf %95, %109 : vector<1x8xf32>
    %cst_34 = arith.constant 1.000000e+00 : f32
    %126 = vector.broadcast %cst_34 : f32 to vector<8x1xf32>
    %127 = arith.minimumf %124, %126 : vector<8x1xf32>
    %128 = vector.broadcast %127 : vector<8x1xf32> to vector<8x8xf32>
    %129 = arith.mulf %38, %128 : vector<8x8xf32>
    %cst_35 = arith.constant 1.000000e+00 : f32
    %130 = vector.broadcast %cst_35 : f32 to vector<1x8xf32>
    %131 = arith.minimumf %125, %130 : vector<1x8xf32>
    %132 = vector.broadcast %131 : vector<1x8xf32> to vector<8x8xf32>
    %133 = arith.mulf %129, %132 : vector<8x8xf32>
    %cst_36 = arith.constant dense<0.000000e+00> : vector<8xf32>
    %134 = vector.multi_reduction <add>, %133, %cst_36 [1] : vector<8x8xf32> to vector<8xf32>
    %135 = vector.shape_cast %134 : vector<8xf32> to vector<8x1xf32>
    %cst_37 = arith.constant dense<0.000000e+00> : vector<1xf32>
    %136 = vector.multi_reduction <add>, %135, %cst_37 [0] : vector<8x1xf32> to vector<1xf32>
    %137 = vector.shape_cast %136 : vector<1xf32> to vector<1x1xf32>
    %138 = arith.mulf %133, %11 : vector<8x8xf32>
    %cst_38 = arith.constant dense<0.000000e+00> : vector<8xf32>
    %139 = vector.multi_reduction <add>, %138, %cst_38 [1] : vector<8x8xf32> to vector<8xf32>
    %140 = vector.shape_cast %139 : vector<8xf32> to vector<8x1xf32>
    %cst_39 = arith.constant dense<0.000000e+00> : vector<1xf32>
    %141 = vector.multi_reduction <add>, %140, %cst_39 [0] : vector<8x1xf32> to vector<1xf32>
    %142 = vector.shape_cast %141 : vector<1xf32> to vector<1x1xf32>
    %cst_40 = arith.constant 1.000000e+00 : f32
    %143 = vector.broadcast %cst_40 : f32 to vector<1x1xf32>
    %144 = arith.cmpf ogt, %137, %143 : vector<1x1xf32>
    %cst_41 = arith.constant 1.000000e+00 : f32
    %145 = vector.broadcast %cst_41 : f32 to vector<1x1xf32>
    %146 = arith.maximumf %137, %145 : vector<1x1xf32>
    %147 = arith.divf %142, %146 : vector<1x1xf32>
    %148 = arith.select %144, %147, %142 : vector<1x1xi1>, vector<1x1xf32>
    %149 = arith.addf %116, %102 : vector<8x1xf32>
    %150 = arith.addf %123, %109 : vector<1x8xf32>
    %cst_42 = arith.constant 1.000000e+00 : f32
    %151 = vector.broadcast %cst_42 : f32 to vector<8x1xf32>
    %152 = arith.minimumf %149, %151 : vector<8x1xf32>
    %153 = vector.broadcast %152 : vector<8x1xf32> to vector<8x8xf32>
    %154 = arith.mulf %38, %153 : vector<8x8xf32>
    %cst_43 = arith.constant 1.000000e+00 : f32
    %155 = vector.broadcast %cst_43 : f32 to vector<1x8xf32>
    %156 = arith.minimumf %150, %155 : vector<1x8xf32>
    %157 = vector.broadcast %156 : vector<1x8xf32> to vector<8x8xf32>
    %158 = arith.mulf %154, %157 : vector<8x8xf32>
    %cst_44 = arith.constant dense<0.000000e+00> : vector<8xf32>
    %159 = vector.multi_reduction <add>, %158, %cst_44 [1] : vector<8x8xf32> to vector<8xf32>
    %160 = vector.shape_cast %159 : vector<8xf32> to vector<8x1xf32>
    %cst_45 = arith.constant dense<0.000000e+00> : vector<1xf32>
    %161 = vector.multi_reduction <add>, %160, %cst_45 [0] : vector<8x1xf32> to vector<1xf32>
    %162 = vector.shape_cast %161 : vector<1xf32> to vector<1x1xf32>
    %163 = arith.mulf %158, %11 : vector<8x8xf32>
    %cst_46 = arith.constant dense<0.000000e+00> : vector<8xf32>
    %164 = vector.multi_reduction <add>, %163, %cst_46 [1] : vector<8x8xf32> to vector<8xf32>
    %165 = vector.shape_cast %164 : vector<8xf32> to vector<8x1xf32>
    %cst_47 = arith.constant dense<0.000000e+00> : vector<1xf32>
    %166 = vector.multi_reduction <add>, %165, %cst_47 [0] : vector<8x1xf32> to vector<1xf32>
    %167 = vector.shape_cast %166 : vector<1xf32> to vector<1x1xf32>
    %cst_48 = arith.constant 1.000000e+00 : f32
    %168 = vector.broadcast %cst_48 : f32 to vector<1x1xf32>
    %169 = arith.cmpf ogt, %162, %168 : vector<1x1xf32>
    %cst_49 = arith.constant 1.000000e+00 : f32
    %170 = vector.broadcast %cst_49 : f32 to vector<1x1xf32>
    %171 = arith.maximumf %162, %170 : vector<1x1xf32>
    %172 = arith.divf %167, %171 : vector<1x1xf32>
    %173 = arith.select %169, %172, %167 : vector<1x1xi1>, vector<1x1xf32>
    %174 = arith.addf %88, %116 : vector<8x1xf32>
    %175 = arith.addf %95, %123 : vector<1x8xf32>
    %cst_50 = arith.constant 1.000000e+00 : f32
    %176 = vector.broadcast %cst_50 : f32 to vector<8x1xf32>
    %177 = arith.minimumf %174, %176 : vector<8x1xf32>
    %178 = vector.broadcast %177 : vector<8x1xf32> to vector<8x8xf32>
    %179 = arith.mulf %38, %178 : vector<8x8xf32>
    %cst_51 = arith.constant 1.000000e+00 : f32
    %180 = vector.broadcast %cst_51 : f32 to vector<1x8xf32>
    %181 = arith.minimumf %175, %180 : vector<1x8xf32>
    %182 = vector.broadcast %181 : vector<1x8xf32> to vector<8x8xf32>
    %183 = arith.mulf %179, %182 : vector<8x8xf32>
    %cst_52 = arith.constant dense<0.000000e+00> : vector<8xf32>
    %184 = vector.multi_reduction <add>, %183, %cst_52 [1] : vector<8x8xf32> to vector<8xf32>
    %185 = vector.shape_cast %184 : vector<8xf32> to vector<8x1xf32>
    %cst_53 = arith.constant dense<0.000000e+00> : vector<1xf32>
    %186 = vector.multi_reduction <add>, %185, %cst_53 [0] : vector<8x1xf32> to vector<1xf32>
    %187 = vector.shape_cast %186 : vector<1xf32> to vector<1x1xf32>
    %188 = arith.mulf %183, %11 : vector<8x8xf32>
    %cst_54 = arith.constant dense<0.000000e+00> : vector<8xf32>
    %189 = vector.multi_reduction <add>, %188, %cst_54 [1] : vector<8x8xf32> to vector<8xf32>
    %190 = vector.shape_cast %189 : vector<8xf32> to vector<8x1xf32>
    %cst_55 = arith.constant dense<0.000000e+00> : vector<1xf32>
    %191 = vector.multi_reduction <add>, %190, %cst_55 [0] : vector<8x1xf32> to vector<1xf32>
    %192 = vector.shape_cast %191 : vector<1xf32> to vector<1x1xf32>
    %cst_56 = arith.constant 1.000000e+00 : f32
    %193 = vector.broadcast %cst_56 : f32 to vector<1x1xf32>
    %194 = arith.cmpf ogt, %187, %193 : vector<1x1xf32>
    %cst_57 = arith.constant 1.000000e+00 : f32
    %195 = vector.broadcast %cst_57 : f32 to vector<1x1xf32>
    %196 = arith.maximumf %187, %195 : vector<1x1xf32>
    %197 = arith.divf %192, %196 : vector<1x1xf32>
    %198 = arith.select %194, %197, %192 : vector<1x1xi1>, vector<1x1xf32>
    %199 = tpu.iota {dimensions = array<i32: 1>} : vector<1x128xi32>
    %c0_i32 = arith.constant 0 : i32
    %200 = vector.broadcast %c0_i32 : i32 to vector<1x128xi32>
    %201 = arith.cmpi eq, %199, %200 : vector<1x128xi32>
    %202 = arith.extui %201 : vector<1x128xi1> to vector<1x128xi32>
    %203 = arith.sitofp %202 : vector<1x128xi32> to vector<1x128xf32>
    %204 = vector.broadcast %148 : vector<1x1xf32> to vector<1x128xf32>
    %205 = arith.mulf %204, %203 : vector<1x128xf32>
    %c1_i32_58 = arith.constant 1 : i32
    %206 = vector.broadcast %c1_i32_58 : i32 to vector<1x128xi32>
    %207 = arith.cmpi eq, %199, %206 : vector<1x128xi32>
    %208 = arith.extui %207 : vector<1x128xi1> to vector<1x128xi32>
    %209 = arith.sitofp %208 : vector<1x128xi32> to vector<1x128xf32>
    %210 = vector.broadcast %173 : vector<1x1xf32> to vector<1x128xf32>
    %211 = arith.mulf %210, %209 : vector<1x128xf32>
    %212 = arith.addf %205, %211 : vector<1x128xf32>
    %c2_i32 = arith.constant 2 : i32
    %213 = vector.broadcast %c2_i32 : i32 to vector<1x128xi32>
    %214 = arith.cmpi eq, %199, %213 : vector<1x128xi32>
    %215 = arith.extui %214 : vector<1x128xi1> to vector<1x128xi32>
    %216 = arith.sitofp %215 : vector<1x128xi32> to vector<1x128xf32>
    %217 = vector.broadcast %198 : vector<1x1xf32> to vector<1x128xf32>
    %218 = arith.mulf %217, %216 : vector<1x128xf32>
    %219 = arith.addf %212, %218 : vector<1x128xf32>
    %220 = tpu.iota {dimensions = array<i32: 0>} : vector<8x128xi32>
    %c0_i32_59 = arith.constant 0 : i32
    %221 = vector.broadcast %c0_i32_59 : i32 to vector<8x128xi32>
    %222 = arith.cmpi eq, %220, %221 : vector<8x128xi32>
    %223 = arith.extui %222 : vector<8x128xi1> to vector<8x128xi32>
    %224 = arith.sitofp %223 : vector<8x128xi32> to vector<8x128xf32>
    %225 = vector.broadcast %76 : vector<1x128xf32> to vector<8x128xf32>
    %226 = arith.mulf %224, %225 : vector<8x128xf32>
    %c1_i32_60 = arith.constant 1 : i32
    %227 = vector.broadcast %c1_i32_60 : i32 to vector<8x128xi32>
    %228 = arith.cmpi eq, %220, %227 : vector<8x128xi32>
    %229 = arith.extui %228 : vector<8x128xi1> to vector<8x128xi32>
    %230 = arith.sitofp %229 : vector<8x128xi32> to vector<8x128xf32>
    %231 = vector.broadcast %79 : vector<1x128xf32> to vector<8x128xf32>
    %232 = arith.mulf %230, %231 : vector<8x128xf32>
    %233 = arith.addf %226, %232 : vector<8x128xf32>
    %c2_i32_61 = arith.constant 2 : i32
    %234 = vector.broadcast %c2_i32_61 : i32 to vector<8x128xi32>
    %235 = arith.cmpi eq, %220, %234 : vector<8x128xi32>
    %236 = arith.extui %235 : vector<8x128xi1> to vector<8x128xi32>
    %237 = arith.sitofp %236 : vector<8x128xi32> to vector<8x128xf32>
    %238 = vector.broadcast %81 : vector<1x128xf32> to vector<8x128xf32>
    %239 = arith.mulf %237, %238 : vector<8x128xf32>
    %240 = arith.addf %233, %239 : vector<8x128xf32>
    %c3_i32_62 = arith.constant 3 : i32
    %241 = vector.broadcast %c3_i32_62 : i32 to vector<8x128xi32>
    %242 = arith.cmpi eq, %220, %241 : vector<8x128xi32>
    %243 = arith.extui %242 : vector<8x128xi1> to vector<8x128xi32>
    %244 = arith.sitofp %243 : vector<8x128xi32> to vector<8x128xf32>
    %245 = vector.broadcast %219 : vector<1x128xf32> to vector<8x128xf32>
    %246 = arith.mulf %244, %245 : vector<8x128xf32>
    %247 = arith.addf %240, %246 : vector<8x128xf32>
    %c0_63 = arith.constant 0 : index
    %c0_64 = arith.constant 0 : index
    %248 = vector.load %arg6[%c0_63, %c0_64] : memref<8x128xf32, #tpu.memory_space<vmem>>, vector<8x128xf32>
    tpu.vector_store %arg6[%c0_63, %c0_64], %247 {strides = array<i32>} : memref<8x128xf32, #tpu.memory_space<vmem>>, vector<8x128xf32>,
    return
  }
  func.func @transform_0(%arg0: i32) -> (i32, i32) {
    %c0_i32 = arith.constant 0 : i32
    %c0_i32_0 = arith.constant 0 : i32
    %c0_i32_1 = arith.constant 0 : i32
    return %c0_i32, %c0_i32_0 : i32, i32
  }
  func.func @transform_1(%arg0: i32) -> (i32, i32) {
    %c0_i32 = arith.constant 0 : i32
    %c0_i32_0 = arith.constant 0 : i32
    %c0_i32_1 = arith.constant 0 : i32
    return %c0_i32, %c0_i32_0 : i32, i32
  }
  func.func @transform_2(%arg0: i32) -> (i32, i32) {
    %c0_i32 = arith.constant 0 : i32
    %c0_i32_0 = arith.constant 0 : i32
    %c0_i32_1 = arith.constant 0 : i32
    return %c0_i32, %c0_i32_0 : i32, i32
  }
  func.func @transform_3(%arg0: i32) -> (i32, i32) {
    %c0_i32 = arith.constant 0 : i32
    %c0_i32_0 = arith.constant 0 : i32
    %c0_i32_1 = arith.constant 0 : i32
    return %c0_i32, %c0_i32_0 : i32, i32
  }
  func.func @transform_4(%arg0: i32) -> (i32, i32) {
    %c0_i32 = arith.constant 0 : i32
    %c0_i32_0 = arith.constant 0 : i32
    %c0_i32_1 = arith.constant 0 : i32
    return %c0_i32, %c0_i32_0 : i32, i32
  }
  func.func @transform_5(%arg0: i32) -> (i32, i32) {
    %c0_i32 = arith.constant 0 : i32
    %c0_i32_0 = arith.constant 0 : i32
    %c0_i32_1 = arith.constant 0 : i32
    return %c0_i32, %c0_i32_0 : i32, i32
  }
}

</mosaic_0001>

<llo_original>
// kernel: instance_loss.3
$region0: #{instance_loss.3}
  #allocation0 [shape = 'u32[]', space=smem, size = 0x4, offset = 0x4, fixed_abs, tag = 'smem constant byte address 0x4 - core index']
  #allocation1 [shape = 'u32[144,128]{1,0:T(1,128)}', space=vmem, size = 0x12000, scoped, tag = 'internal scratch']
  %s0 = inlined_call_operand.vmem [shape: bf16[8,256], index: 0, kind: input, shape index: {}]
  %s1 = inlined_call_operand.vmem [shape: bf16[8,256], index: 1, kind: input, shape index: {}]
  %s2 = inlined_call_operand.vmem [shape: f32[2,8,8], index: 2, kind: output, shape index: {0}]
  %s3 = inlined_call_operand.vmem [shape: f32[2,8,1], index: 3, kind: output, shape index: {1}]
  %s4 = inlined_call_operand.vmem [shape: f32[2,8,1], index: 4, kind: output, shape index: {2}]
  %5 = xla_tuple %s2, %s3, %s4
  %s6 = sld [smem:[#allocation0]]
  $region61: #{instance_loss.3} parent=0
    _
  %s8 = ssub.s32 1, %s6
  %s9 = scalar_select 0, %s8, %s6
  loop: start=0, step=1, limit=4
  $region2: #{instance_loss.3} parent=0 // loop_pre_header
    _
  $region3: #{instance_loss.3} parent=0 // loop_header
    %s11 = sphi 0, %s15
    %p12 = scmp.ge.s32.totalorder %s11, 4
    %s18 = sphi 0, %s30
    %s19 = sphi 0, %s26
    %s20 = sphi 0, %s18
    %s21 = sphi 0, %s19
    %s22 = sphi 0, %s20
    %s23 = sphi 0, %s21
    %s35 = sphi 0, %s37
    %s38 = sphi 0, %s35
    %s39 = sphi 0, %s38
    %s55 = sphi 0, %s39
    %s63 = sphi 0, %s65
    %s66 = sphi 0, %s63
    %s67 = sphi 0, %s66
    %s83 = sphi 0, %s67
    %s89 = sphi 0, %s91
    %s92 = sphi 0, %s89
    %s93 = sphi 0, %s92
    %s109 = sphi 0, %s93
    %s115 = sphi 0, %s117
    %s118 = sphi 0, %s115
    %s119 = sphi 0, %s118
    %s135 = sphi 0, %s119
    %s141 = sphi 0, %s143
    %s144 = sphi 0, %s141
    %s145 = sphi 0, %s144
    %s161 = sphi 0, %s145
  $region4: #{instance_loss.3} parent=0 // loop_header_branch
    %14 = sbr.rel (%p12) target = $region8
  $region5: #{instance_loss.3} parent=0 // loop_body
    %s16 = ssub.s32 %s11, 1
    %s17 = ssub.s32 %s11, 2
    %s24 = sadd.s32 1, %s19
    %p25 = scmp.ge.s32.totalorder %s24, 1
    %s26 = scalar_select %p25, 0, %s24
    %s27 = sadd.s32 1, %s18
    %s28 = scalar_select %p25, %s27, %s18
    %p29 = scmp.ge.s32.totalorder %s28, 2
    %s30 = scalar_select %p29, 0, %s28
    %s31 = sadd.s32 %s18, %s19
    %s32 = sadd.s32 %s30, %s26
    %s33 = ssub.s32 %s31, %s32
    %p34 = scmp.eq.s32.totalorder %s33, 0
    %s36 = sadd.s32 %s35, 1
    %s37 = scalar_select %p34, %s35, %s36
    %p40 = pneg %p34
    %p41 = scmp.eq.s32.totalorder %s11, 1
    %p42 = por %p40, %p41
    %p43 = scmp.ne.s32.totalorder %s35, %s38
    %p44 = scmp.eq.s32.totalorder %s11, 0
    %p45 = por %p43, %p44
    %p46 = scmp.ne.s32.totalorder %s35, %s38
    %p47 = scmp.eq.s32.totalorder %s16, 1
    %p48 = por %p46, %p47
    %p49 = scmp.ne.s32.totalorder %s38, %s39
    %p50 = scmp.eq.s32.totalorder %s16, 0
    %p51 = por %p49, %p50
    %p52 = scmp.ne.s32.totalorder %s38, %s39
    %p53 = scmp.eq.s32.totalorder %s17, 1
    %p54 = por %p52, %p53
    %p56 = scmp.ne.s32.totalorder %s39, %s55
    %p57 = scmp.eq.s32.totalorder %s17, 0
    %p58 = por %p56, %p57
    %s59 = sadd.s32 %s18, %s19
    %s60 = sadd.s32 %s30, %s26
    %s61 = ssub.s32 %s59, %s60
    %p62 = scmp.eq.s32.totalorder %s61, 0
    %s64 = sadd.s32 %s63, 1
    %s65 = scalar_select %p62, %s63, %s64
    %p68 = pneg %p62
    %p69 = scmp.eq.s32.totalorder %s11, 1
    %p70 = por %p68, %p69
    %p71 = scmp.ne.s32.totalorder %s63, %s66
    %p72 = scmp.eq.s32.totalorder %s11, 0
    %p73 = por %p71, %p72
    %p74 = scmp.ne.s32.totalorder %s63, %s66
    %p75 = scmp.eq.s32.totalorder %s16, 1
    %p76 = por %p74, %p75
    %p77 = scmp.ne.s32.totalorder %s66, %s67
    %p78 = scmp.eq.s32.totalorder %s16, 0
    %p79 = por %p77, %p78
    %p80 = scmp.ne.s32.totalorder %s66, %s67
    %p81 = scmp.eq.s32.totalorder %s17, 1
    %p82 = por %p80, %p81
    %p84 = scmp.ne.s32.totalorder %s67, %s83
    %p85 = scmp.eq.s32.totalorder %s17, 0
    %p86 = por %p84, %p85
    %s87 = ssub.s32 %s18, %s30
    %p88 = scmp.eq.s32.totalorder %s87, 0
    %s90 = sadd.s32 %s89, 1
    %s91 = scalar_select %p88, %s89, %s90
    %p94 = pneg %p88
    %p95 = scmp.eq.s32.totalorder %s11, 1
    %p96 = por %p94, %p95
    %p97 = scmp.ne.s32.totalorder %s89, %s92
    %p98 = scmp.eq.s32.totalorder %s11, 0
    %p99 = por %p97, %p98
    %p100 = scmp.ne.s32.totalorder %s89, %s92
    %p101 = scmp.eq.s32.totalorder %s16, 1
    %p102 = por %p100, %p101
    %p103 = scmp.ne.s32.totalorder %s92, %s93
    %p104 = scmp.eq.s32.totalorder %s16, 0
    %p105 = por %p103, %p104
    %p106 = scmp.ne.s32.totalorder %s92, %s93
    %p107 = scmp.eq.s32.totalorder %s17, 1
    %p108 = por %p106, %p107
    %p110 = scmp.ne.s32.totalorder %s93, %s109
    %p111 = scmp.eq.s32.totalorder %s17, 0
    %p112 = por %p110, %p111
    %s113 = ssub.s32 %s18, %s30
    %p114 = scmp.eq.s32.totalorder %s113, 0
    %s116 = sadd.s32 %s115, 1
    %s117 = scalar_select %p114, %s115, %s116
    %p120 = pneg %p114
    %p121 = scmp.eq.s32.totalorder %s11, 1
    %p122 = por %p120, %p121
    %p123 = scmp.ne.s32.totalorder %s115, %s118
    %p124 = scmp.eq.s32.totalorder %s11, 0
    %p125 = por %p123, %p124
    %p126 = scmp.ne.s32.totalorder %s115, %s118
    %p127 = scmp.eq.s32.totalorder %s16, 1
    %p128 = por %p126, %p127
    %p129 = scmp.ne.s32.totalorder %s118, %s119
    %p130 = scmp.eq.s32.totalorder %s16, 0
    %p131 = por %p129, %p130
    %p132 = scmp.ne.s32.totalorder %s118, %s119
    %p133 = scmp.eq.s32.totalorder %s17, 1
    %p134 = por %p132, %p133
    %p136 = scmp.ne.s32.totalorder %s119, %s135
    %p137 = scmp.eq.s32.totalorder %s17, 0
    %p138 = por %p136, %p137
    %s139 = ssub.s32 %s18, %s30
    %p140 = scmp.eq.s32.totalorder %s139, 0
    %s142 = sadd.s32 %s141, 1
    %s143 = scalar_select %p140, %s141, %s142
    %p146 = pneg %p140
    %p147 = scmp.eq.s32.totalorder %s11, 1
    %p148 = por %p146, %p147
    %p149 = scmp.ne.s32.totalorder %s141, %s144
    %p150 = scmp.eq.s32.totalorder %s11, 0
    %p151 = por %p149, %p150
    %p152 = scmp.ne.s32.totalorder %s141, %s144
    %p153 = scmp.eq.s32.totalorder %s16, 1
    %p154 = por %p152, %p153
    %p155 = scmp.ne.s32.totalorder %s144, %s145
    %p156 = scmp.eq.s32.totalorder %s16, 0
    %p157 = por %p155, %p156
    %p158 = scmp.ne.s32.totalorder %s144, %s145
    %p159 = scmp.eq.s32.totalorder %s17, 1
    %p160 = por %p158, %p159
    %p162 = scmp.ne.s32.totalorder %s145, %s161
    %p163 = scmp.eq.s32.totalorder %s17, 0
    %p164 = por %p162, %p163
    %p165 = scmp.le.s32.totalorder 1, %s11
    %p166 = scmp.lt.s32.totalorder %s11, 3
    %p167 = pnand %p165, %p166
    %p168 = pneg %p167
    // Predicated region
    $region9: #{instance_loss.3} parent=5 // pred_check
      _
    $region10: #{instance_loss.3} parent=5 // pred_check_branch
      %170 = sbr.rel (%p167) target = $region12
    $region11: #{instance_loss.3} parent=5 // pred_region
      %s171 = ssub.s32 %s11, 1
    $region12: #{instance_loss.3} parent=5 // pred_fallthru
      _
    %p172 = scmp.lt.s32.totalorder %s11, 2
    // Predicated region
    $region13: #{instance_loss.3} parent=5 // pred_check
      %p173 = pneg %p172
    $region14: #{instance_loss.3} parent=5 // pred_check_branch
      %175 = sbr.rel (%p173) target = $region16
    $region15: #{instance_loss.3} parent=5 // pred_region
      // Predicated region
      $region17: #{instance_loss.3} parent=15 // pred_check
        %p176 = pneg %p45
      $region18: #{instance_loss.3} parent=15 // pred_check_branch
        %178 = sbr.rel (%p176) target = $region20
      $region19: #{instance_loss.3} parent=15 // pred_region
        %s179 = sadd.s32 %s18, %s19
        %p180 = scmp.lt.s32.totalorder %s179, 1
        %s181 = scalar_select %p180, %s179, 1
        %s182 = smul.addr %s181, 4
        %s183 = scalar_lea.vmem %s0, %s182
        %s184 = sadd.s32 %s18, %s19
      $region20: #{instance_loss.3} parent=15 // pred_fallthru
        _
      // Predicated region
      $region21: #{instance_loss.3} parent=15 // pred_check
        %p185 = pneg %p73
      $region22: #{instance_loss.3} parent=15 // pred_check_branch
        %187 = sbr.rel (%p185) target = $region24
      $region23: #{instance_loss.3} parent=15 // pred_region
        %s188 = sadd.s32 %s18, %s19
        %p189 = scmp.lt.s32.totalorder %s188, 1
        %s190 = scalar_select %p189, %s188, 1
        %s191 = smul.addr %s190, 4
        %s192 = scalar_lea.vmem %s1, %s191
        %s193 = sadd.s32 %s18, %s19
      $region24: #{instance_loss.3} parent=15 // pred_fallthru
        _
    $region16: #{instance_loss.3} parent=5 // pred_fallthru
      _
    %p194 = scmp.le.s32.totalorder 1, %s11
    %p195 = scmp.lt.s32.totalorder %s11, 3
    %p196 = pnand %p194, %p195
    %p197 = pneg %p196
    // Predicated region
    $region25: #{instance_loss.3} parent=5 // pred_check
      _
    $region26: #{instance_loss.3} parent=5 // pred_check_branch
      %199 = sbr.rel (%p196) target = $region28
    $region27: #{instance_loss.3} parent=5 // pred_region
      %s200 = ssub.s32 %s11, 1
      %s201 = sadd.s32 %s20, %s21
      %p202 = scmp.lt.s32.totalorder %s201, 1
      %s203 = scalar_select %p202, %s201, 1
      %s204 = smul.addr %s203, 4
      %s205 = scalar_lea.vmem %s0, %s204
      %p206 = pneg %p51
      %p207 = pneg %p48
      %s208 = sadd.s32 %s20, %s21
      %p209 = scmp.lt.s32.totalorder %s208, 1
      %s210 = scalar_select %p209, %s208, 1
      %s211 = smul.addr %s210, 4
      %s212 = scalar_lea.vmem %s1, %s211
      %p213 = pneg %p79
      %p214 = pneg %p76
      %p215 = pneg %p105
      %p216 = pneg %p102
      %p217 = scmp.lt.s32.totalorder %s20, 1
      %s218 = scalar_select %p217, %s20, 1
      %s219 = smul.addr %s218, 8
      %s220 = scalar_lea.vmem %s2, %s219
      %p221 = pneg %p131
      %p222 = pneg %p128
      %p223 = scmp.lt.s32.totalorder %s20, 1
      %s224 = scalar_select %p223, %s20, 1
      %s225 = smul.addr %s224, 8
      %s226 = scalar_lea.vmem %s3, %s225
      %p227 = pneg %p157
      %p228 = pneg %p154
      %p229 = scmp.lt.s32.totalorder %s20, 1
      %s230 = scalar_select %p229, %s20, 1
      %s231 = smul.addr %s230, 8
      %s232 = scalar_lea.vmem %s4, %s231
      %s233 = sadd.s32 %s20, %s21
      %p234 = scmp.lt.s32.totalorder %s233, 1
      %s235 = scalar_select %p234, %s233, 1
      %s236 = smul.addr %s235, 4
      %s237 = scalar_lea.vmem %s0, %s236
      %s238 = sadd.s32 %s20, %s21
      %s239 = sadd.s32 %s20, %s21
      %p240 = scmp.lt.s32.totalorder %s239, 1
      %s241 = scalar_select %p240, %s239, 1
      %s242 = smul.addr %s241, 4
      %s243 = scalar_lea.vmem %s1, %s242
      %s244 = sadd.s32 %s20, %s21
      %p245 = scmp.lt.s32.totalorder %s20, 1
      %s246 = scalar_select %p245, %s20, 1
      %s247 = smul.addr %s246, 8
      %s248 = scalar_lea.vmem %s2, %s247
      %p249 = scmp.lt.s32.totalorder %s20, 1
      %s250 = scalar_select %p249, %s20, 1
      %s251 = smul.addr %s250, 8
      %s252 = scalar_lea.vmem %s3, %s251
      %p253 = scmp.lt.s32.totalorder %s20, 1
      %s254 = scalar_select %p253, %s20, 1
      %s255 = smul.addr %s254, 8
      %s256 = scalar_lea.vmem %s4, %s255
      %p257 = scmp.eq.s32.totalorder %s21, 0
      // Predicated region
      $region29: #{instance_loss.3} parent=27 // pred_check
        %p258 = pneg %p257
      $region30: #{instance_loss.3} parent=27 // pred_check_branch
        %260 = sbr.rel (%p258) target = $region32
      $region31: #{instance_loss.3} parent=27 // pred_region
        %vm261 = vcmask 64512
        %262 = vst.msk [vmem:[%s248] sm:$0xff] %vm261, 0.0
        %vm263 = vcmask 7168
        %264 = vst.msk [vmem:[%s252] sm:$0xff] %vm263, 0.0
        %265 = vst.msk [vmem:[%s256] sm:$0xff] %vm263, 0.0
      $region32: #{instance_loss.3} parent=27 // pred_fallthru
        _
      %v266 = vld [vmem:[%s237] sm:$0xf]
      %v267 = vunpack.c.l.bf16 %v266
      %v268 = vld [vmem:[%s243] sm:$0xf]
      %v269 = vunpack.c.l.bf16 %v268
      %v270 = vld [vmem:[%s248] sm:$0xff]
      %271 = vmatprep.subr.mxu0 0.0
      %272 = vmatpush1.xpose.msra.mxu0 %v269
      %273 = vmatprep.subr.mxu0 0.0
      %274 = vmatpush1.xpose.msra.mxu0 0.0
      %275 = vmatprep.subr.mxu0 0.0
      %276 = vmatpush1.xpose.msra.mxu0 0.0
      %277 = vmatprep.subr.mxu0 0.0
      %278 = vmatpush1.xpose.msra.mxu0 0.0
      %279 = vmatprep.subr.mxu0 0.0
      %280 = vmatpush1.xpose.msra.mxu0 0.0
      %281 = vmatprep.subr.mxu0 0.0
      %282 = vmatpush1.xpose.msra.mxu0 0.0
      %283 = vmatprep.subr.mxu0 0.0
      %284 = vmatpush1.xpose.msra.mxu0 0.0
      %285 = vmatprep.subr.mxu0 0.0
      %286 = vmatpush1.xpose.msra.mxu0 0.0
      %287 = vmatprep.subr.mxu0 0.0
      %288 = vmatpush1.xpose.msra.mxu0 0.0
      %289 = vmatprep.subr.mxu0 0.0
      %290 = vmatpush1.xpose.msra.mxu0 0.0
      %291 = vmatprep.subr.mxu0 0.0
      %292 = vmatpush1.xpose.msra.mxu0 0.0
      %293 = vmatprep.subr.mxu0 0.0
      %294 = vmatpush1.xpose.msra.mxu0 0.0
      %295 = vmatprep.subr.mxu0 0.0
      %296 = vmatpush1.xpose.msra.mxu0 0.0
      %297 = vmatprep.subr.mxu0 0.0
      %298 = vmatpush1.xpose.msra.mxu0 0.0
      %299 = vmatprep.subr.mxu0 0.0
      %300 = vmatpush1.xpose.msra.mxu0 0.0
      %301 = vmatprep.subr.mxu0 0.0
      %302 = vmatpush1.xpose.msra.mxu0 0.0
      %303 = vmatprep.subr.mxu0 0.0
      %304 = vmatpush1.xpose.msra.mxu0 0.0
      %305 = vmatprep.subr.mxu0 0.0
      %306 = vmatpush1.xpose.msra.mxu0 0.0
      %307 = vmatprep.subr.mxu0 0.0
      %308 = vmatpush1.xpose.msra.mxu0 0.0
      %309 = vmatprep.subr.mxu0 0.0
      %310 = vmatpush1.xpose.msra.mxu0 0.0
      %311 = vmatprep.subr.mxu0 0.0
      %312 = vmatpush1.xpose.msra.mxu0 0.0
      %313 = vmatprep.subr.mxu0 0.0
      %314 = vmatpush1.xpose.msra.mxu0 0.0
      %315 = vmatprep.subr.mxu0 0.0
      %316 = vmatpush1.xpose.msra.mxu0 0.0
      %317 = vmatprep.subr.mxu0 0.0
      %318 = vmatpush1.xpose.msra.mxu0 0.0
      %319 = vmatprep.subr.mxu0 0.0
      %320 = vmatpush1.xpose.msra.mxu0 0.0
      %321 = vmatprep.subr.mxu0 0.0
      %322 = vmatpush1.xpose.msra.mxu0 0.0
      %323 = vmatprep.subr.mxu0 0.0
      %324 = vmatpush1.xpose.msra.mxu0 0.0
      %325 = vmatprep.subr.mxu0 0.0
      %326 = vmatpush1.xpose.msra.mxu0 0.0
      %327 = vmatprep.subr.mxu0 0.0
      %328 = vmatpush1.xpose.msra.mxu0 0.0
      %329 = vmatprep.subr.mxu0 0.0
      %330 = vmatpush1.xpose.msra.mxu0 0.0
      %331 = vmatprep.subr.mxu0 0.0
      %332 = vmatpush1.xpose.msra.mxu0 0.0
      %333 = vmatprep.subr.mxu0 0.0
      %334 = vmatpush1.xpose.msra.mxu0 0.0
      %335 = vmatprep.mubr.f32.mxu0 0.0
      %336 = vmatmul.mubr.f32.gmra.mrb[0].mxu0 %v267
      %v337 = vpop.f32.mrb[0].mxu0
      %v338 = vadd.f32 0.0, %v337
      %v339 = vpop.f32.mrb[0].mxu0
      %340 = vdwg.mxu0
      %v341 = vadd.f32 %v270, %v338
      %vm342 = vcmask 64512
      %343 = vst.msk [vmem:[%s248] sm:$0xff] %vm342, %v341
      %v344 = vmul.f32 %v269, %v269
      %v345 = vrot.slane %v344, 4
      %v346 = vadd.f32 %v344, %v345
      %v347 = vrot.slane %v346, 2
      %v348 = vadd.f32 %v346, %v347
      %v349 = vrot.slane %v348, 1
      %v350 = vadd.f32 %v348, %v349
      %v351 = vld [vmem:[%s252] sm:$0xff]
      %v352 = vmul.f32 %v267, %v350
      %353 = vadd.xlane.f32.xlu0 %v352
      %v354 = vpop.xlane.xlu0 %353
      %v355 = vadd.f32 %v351, %v354
      %vm356 = vcmask 7168
      %357 = vst.msk [vmem:[%s252] sm:$0xff] %vm356, %v355
      %v358 = vld [vmem:[%s256] sm:$0xff]
      %359 = vadd.xlane.f32.xlu0 %v267
      %v360 = vpop.xlane.xlu0 %359
      %v361 = vadd.f32 %v358, %v360
      %362 = vst.msk [vmem:[%s256] sm:$0xff] %vm356, %v361
      %p363 = scmp.lt.s32.totalorder %s20, 1
      %s364 = scalar_select %p363, %s20, 1
      %s365 = smul.addr %s364, 8
      %s366 = scalar_lea.vmem %s2, %s365
      %p367 = scmp.lt.s32.totalorder %s20, 1
      %s368 = scalar_select %p367, %s20, 1
      %s369 = smul.addr %s368, 8
      %s370 = scalar_lea.vmem %s3, %s369
      %p371 = scmp.lt.s32.totalorder %s20, 1
      %s372 = scalar_select %p371, %s20, 1
      %s373 = smul.addr %s372, 8
      %s374 = scalar_lea.vmem %s4, %s373
      // Predicated region
      $region33: #{instance_loss.3} parent=27 // pred_check
        %p375 = pneg %p102
      $region34: #{instance_loss.3} parent=27 // pred_check_branch
        %377 = sbr.rel (%p375) target = $region36
      $region35: #{instance_loss.3} parent=27 // pred_region
        _
      $region36: #{instance_loss.3} parent=27 // pred_fallthru
        _
      // Predicated region
      $region37: #{instance_loss.3} parent=27 // pred_check
        %p378 = pneg %p128
      $region38: #{instance_loss.3} parent=27 // pred_check_branch
        %380 = sbr.rel (%p378) target = $region40
      $region39: #{instance_loss.3} parent=27 // pred_region
        _
      $region40: #{instance_loss.3} parent=27 // pred_fallthru
        _
      // Predicated region
      $region41: #{instance_loss.3} parent=27 // pred_check
        %p381 = pneg %p154
      $region42: #{instance_loss.3} parent=27 // pred_check_branch
        %383 = sbr.rel (%p381) target = $region44
      $region43: #{instance_loss.3} parent=27 // pred_region
        _
      $region44: #{instance_loss.3} parent=27 // pred_fallthru
        _
    $region28: #{instance_loss.3} parent=5 // pred_fallthru
      _
    %p384 = scmp.le.s32.totalorder 2, %s11
    // Predicated region
    $region45: #{instance_loss.3} parent=5 // pred_check
      %p385 = pneg %p384
    $region46: #{instance_loss.3} parent=5 // pred_check_branch
      %387 = sbr.rel (%p385) target = $region48
    $region47: #{instance_loss.3} parent=5 // pred_region
      %s388 = ssub.s32 %s11, 2
      // Predicated region
      $region49: #{instance_loss.3} parent=47 // pred_check
        %p389 = pneg %p108
      $region50: #{instance_loss.3} parent=47 // pred_check_branch
        %391 = sbr.rel (%p389) target = $region52
      $region51: #{instance_loss.3} parent=47 // pred_region
        %p392 = scmp.lt.s32.totalorder %s22, 1
        %s393 = scalar_select %p392, %s22, 1
        %s394 = smul.addr %s393, 8
        %s395 = scalar_lea.vmem %s2, %s394
      $region52: #{instance_loss.3} parent=47 // pred_fallthru
        _
      // Predicated region
      $region53: #{instance_loss.3} parent=47 // pred_check
        %p396 = pneg %p134
      $region54: #{instance_loss.3} parent=47 // pred_check_branch
        %398 = sbr.rel (%p396) target = $region56
      $region55: #{instance_loss.3} parent=47 // pred_region
        %p399 = scmp.lt.s32.totalorder %s22, 1
        %s400 = scalar_select %p399, %s22, 1
        %s401 = smul.addr %s400, 8
        %s402 = scalar_lea.vmem %s3, %s401
      $region56: #{instance_loss.3} parent=47 // pred_fallthru
        _
      // Predicated region
      $region57: #{instance_loss.3} parent=47 // pred_check
        %p403 = pneg %p160
      $region58: #{instance_loss.3} parent=47 // pred_check_branch
        %405 = sbr.rel (%p403) target = $region60
      $region59: #{instance_loss.3} parent=47 // pred_region
        %p406 = scmp.lt.s32.totalorder %s22, 1
        %s407 = scalar_select %p406, %s22, 1
        %s408 = smul.addr %s407, 8
        %s409 = scalar_lea.vmem %s4, %s408
      $region60: #{instance_loss.3} parent=47 // pred_fallthru
        _
    $region48: #{instance_loss.3} parent=5 // pred_fallthru
      _
  $region6: #{instance_loss.3} parent=0 // loop_footer
    %s15 = sadd.s32 1, %s11
  $region7: #{instance_loss.3} parent=0 // loop_footer_branch
    %10 = sbr.rel target = $region3
  $region8: #{instance_loss.3} parent=0 // loop_exit
    _

// kernel: instance_loss.4
$region0: #{instance_loss.4}
  #allocation0 [shape = 'u32[]', space=smem, size = 0x4, offset = 0x4, fixed_abs, tag = 'smem constant byte address 0x4 - core index']
  #allocation1 [shape = 'u32[144,128]{1,0:T(1,128)}', space=vmem, size = 0x12000, scoped, tag = 'internal scratch']
  %s0 = inlined_call_operand.vmem [shape: f32[8,8], index: 0, kind: input, shape index: {}]
  %s1 = inlined_call_operand.vmem [shape: bf16[8,256], index: 1, kind: input, shape index: {}]
  %s2 = inlined_call_operand.vmem [shape: bf16[8,256], index: 2, kind: input, shape index: {}]
  %s3 = inlined_call_operand.vmem [shape: f32[2,8,8], index: 3, kind: output, shape index: {}]
  %s4 = sld [smem:[#allocation0]]
  $region49: #{instance_loss.4} parent=0
    _
  %s6 = ssub.s32 1, %s4
  %s7 = scalar_select 0, %s6, %s4
  loop: start=0, step=1, limit=4
  $region2: #{instance_loss.4} parent=0 // loop_pre_header
    _
  $region3: #{instance_loss.4} parent=0 // loop_header
    %s9 = sphi 0, %s13
    %p10 = scmp.ge.s32.totalorder %s9, 4
    %s16 = sphi 0, %s28
    %s17 = sphi 0, %s24
    %s18 = sphi 0, %s16
    %s19 = sphi 0, %s17
    %s20 = sphi 0, %s18
    %s21 = sphi 0, %s19
    %s29 = sphi 0, %s29
    %s31 = sphi 0, %s29
    %s32 = sphi 0, %s31
    %s46 = sphi 0, %s32
    %s54 = sphi 0, %s56
    %s57 = sphi 0, %s54
    %s58 = sphi 0, %s57
    %s74 = sphi 0, %s58
    %s82 = sphi 0, %s84
    %s85 = sphi 0, %s82
    %s86 = sphi 0, %s85
    %s102 = sphi 0, %s86
    %s108 = sphi 0, %s110
    %s111 = sphi 0, %s108
    %s112 = sphi 0, %s111
    %s128 = sphi 0, %s112
  $region4: #{instance_loss.4} parent=0 // loop_header_branch
    %12 = sbr.rel (%p10) target = $region8
  $region5: #{instance_loss.4} parent=0 // loop_body
    %s14 = ssub.s32 %s9, 1
    %s15 = ssub.s32 %s9, 2
    %s22 = sadd.s32 1, %s17
    %p23 = scmp.ge.s32.totalorder %s22, 1
    %s24 = scalar_select %p23, 0, %s22
    %s25 = sadd.s32 1, %s16
    %s26 = scalar_select %p23, %s25, %s16
    %p27 = scmp.ge.s32.totalorder %s26, 2
    %s28 = scalar_select %p27, 0, %s26
    %s30 = sadd.s32 %s29, 1
    %p33 = scmp.eq.s32.totalorder %s9, 1
    %p34 = scmp.ne.s32.totalorder %s29, %s31
    %p35 = scmp.eq.s32.totalorder %s9, 0
    %p36 = por %p34, %p35
    %p37 = scmp.ne.s32.totalorder %s29, %s31
    %p38 = scmp.eq.s32.totalorder %s14, 1
    %p39 = por %p37, %p38
    %p40 = scmp.ne.s32.totalorder %s31, %s32
    %p41 = scmp.eq.s32.totalorder %s14, 0
    %p42 = por %p40, %p41
    %p43 = scmp.ne.s32.totalorder %s31, %s32
    %p44 = scmp.eq.s32.totalorder %s15, 1
    %p45 = por %p43, %p44
    %p47 = scmp.ne.s32.totalorder %s32, %s46
    %p48 = scmp.eq.s32.totalorder %s15, 0
    %p49 = por %p47, %p48
    %s50 = sadd.s32 %s16, %s17
    %s51 = sadd.s32 %s28, %s24
    %s52 = ssub.s32 %s50, %s51
    %p53 = scmp.eq.s32.totalorder %s52, 0
    %s55 = sadd.s32 %s54, 1
    %s56 = scalar_select %p53, %s54, %s55
    %p59 = pneg %p53
    %p60 = scmp.eq.s32.totalorder %s9, 1
    %p61 = por %p59, %p60
    %p62 = scmp.ne.s32.totalorder %s54, %s57
    %p63 = scmp.eq.s32.totalorder %s9, 0
    %p64 = por %p62, %p63
    %p65 = scmp.ne.s32.totalorder %s54, %s57
    %p66 = scmp.eq.s32.totalorder %s14, 1
    %p67 = por %p65, %p66
    %p68 = scmp.ne.s32.totalorder %s57, %s58
    %p69 = scmp.eq.s32.totalorder %s14, 0
    %p70 = por %p68, %p69
    %p71 = scmp.ne.s32.totalorder %s57, %s58
    %p72 = scmp.eq.s32.totalorder %s15, 1
    %p73 = por %p71, %p72
    %p75 = scmp.ne.s32.totalorder %s58, %s74
    %p76 = scmp.eq.s32.totalorder %s15, 0
    %p77 = por %p75, %p76
    %s78 = sadd.s32 %s16, %s17
    %s79 = sadd.s32 %s28, %s24
    %s80 = ssub.s32 %s78, %s79
    %p81 = scmp.eq.s32.totalorder %s80, 0
    %s83 = sadd.s32 %s82, 1
    %s84 = scalar_select %p81, %s82, %s83
    %p87 = pneg %p81
    %p88 = scmp.eq.s32.totalorder %s9, 1
    %p89 = por %p87, %p88
    %p90 = scmp.ne.s32.totalorder %s82, %s85
    %p91 = scmp.eq.s32.totalorder %s9, 0
    %p92 = por %p90, %p91
    %p93 = scmp.ne.s32.totalorder %s82, %s85
    %p94 = scmp.eq.s32.totalorder %s14, 1
    %p95 = por %p93, %p94
    %p96 = scmp.ne.s32.totalorder %s85, %s86
    %p97 = scmp.eq.s32.totalorder %s14, 0
    %p98 = por %p96, %p97
    %p99 = scmp.ne.s32.totalorder %s85, %s86
    %p100 = scmp.eq.s32.totalorder %s15, 1
    %p101 = por %p99, %p100
    %p103 = scmp.ne.s32.totalorder %s86, %s102
    %p104 = scmp.eq.s32.totalorder %s15, 0
    %p105 = por %p103, %p104
    %s106 = ssub.s32 %s16, %s28
    %p107 = scmp.eq.s32.totalorder %s106, 0
    %s109 = sadd.s32 %s108, 1
    %s110 = scalar_select %p107, %s108, %s109
    %p113 = pneg %p107
    %p114 = scmp.eq.s32.totalorder %s9, 1
    %p115 = por %p113, %p114
    %p116 = scmp.ne.s32.totalorder %s108, %s111
    %p117 = scmp.eq.s32.totalorder %s9, 0
    %p118 = por %p116, %p117
    %p119 = scmp.ne.s32.totalorder %s108, %s111
    %p120 = scmp.eq.s32.totalorder %s14, 1
    %p121 = por %p119, %p120
    %p122 = scmp.ne.s32.totalorder %s111, %s112
    %p123 = scmp.eq.s32.totalorder %s14, 0
    %p124 = por %p122, %p123
    %p125 = scmp.ne.s32.totalorder %s111, %s112
    %p126 = scmp.eq.s32.totalorder %s15, 1
    %p127 = por %p125, %p126
    %p129 = scmp.ne.s32.totalorder %s112, %s128
    %p130 = scmp.eq.s32.totalorder %s15, 0
    %p131 = por %p129, %p130
    %p132 = scmp.le.s32.totalorder 1, %s9
    %p133 = scmp.lt.s32.totalorder %s9, 3
    %p134 = pnand %p132, %p133
    %p135 = pneg %p134
    // Predicated region
    $region9: #{instance_loss.4} parent=5 // pred_check
      _
    $region10: #{instance_loss.4} parent=5 // pred_check_branch
      %137 = sbr.rel (%p134) target = $region12
    $region11: #{instance_loss.4} parent=5 // pred_region
      %s138 = ssub.s32 %s9, 1
      // Predicated region
      $region13: #{instance_loss.4} parent=11 // pred_check
        %p139 = pneg %p42
      $region14: #{instance_loss.4} parent=11 // pred_check_branch
        %141 = sbr.rel (%p139) target = $region16
      $region15: #{instance_loss.4} parent=11 // pred_region
        _
      $region16: #{instance_loss.4} parent=11 // pred_fallthru
        _
    $region12: #{instance_loss.4} parent=5 // pred_fallthru
      _
    %p142 = scmp.lt.s32.totalorder %s9, 2
    // Predicated region
    $region17: #{instance_loss.4} parent=5 // pred_check
      %p143 = pneg %p142
    $region18: #{instance_loss.4} parent=5 // pred_check_branch
      %145 = sbr.rel (%p143) target = $region20
    $region19: #{instance_loss.4} parent=5 // pred_region
      // Predicated region
      $region21: #{instance_loss.4} parent=19 // pred_check
        %p146 = pneg %p64
      $region22: #{instance_loss.4} parent=19 // pred_check_branch
        %148 = sbr.rel (%p146) target = $region24
      $region23: #{instance_loss.4} parent=19 // pred_region
        %s149 = sadd.s32 %s16, %s17
        %p150 = scmp.lt.s32.totalorder %s149, 1
        %s151 = scalar_select %p150, %s149, 1
        %s152 = smul.addr %s151, 4
        %s153 = scalar_lea.vmem %s1, %s152
        %s154 = sadd.s32 %s16, %s17
      $region24: #{instance_loss.4} parent=19 // pred_fallthru
        _
      // Predicated region
      $region25: #{instance_loss.4} parent=19 // pred_check
        %p155 = pneg %p92
      $region26: #{instance_loss.4} parent=19 // pred_check_branch
        %157 = sbr.rel (%p155) target = $region28
      $region27: #{instance_loss.4} parent=19 // pred_region
        %s158 = sadd.s32 %s16, %s17
        %p159 = scmp.lt.s32.totalorder %s158, 1
        %s160 = scalar_select %p159, %s158, 1
        %s161 = smul.addr %s160, 4
        %s162 = scalar_lea.vmem %s2, %s161
        %s163 = sadd.s32 %s16, %s17
      $region28: #{instance_loss.4} parent=19 // pred_fallthru
        _
    $region20: #{instance_loss.4} parent=5 // pred_fallthru
      _
    %p164 = scmp.le.s32.totalorder 1, %s9
    %p165 = scmp.lt.s32.totalorder %s9, 3
    %p166 = pnand %p164, %p165
    %p167 = pneg %p166
    // Predicated region
    $region29: #{instance_loss.4} parent=5 // pred_check
      _
    $region30: #{instance_loss.4} parent=5 // pred_check_branch
      %169 = sbr.rel (%p166) target = $region32
    $region31: #{instance_loss.4} parent=5 // pred_region
      %s170 = ssub.s32 %s9, 1
      %p171 = pneg %p42
      %p172 = pneg %p39
      %s173 = sadd.s32 %s18, %s19
      %p174 = scmp.lt.s32.totalorder %s173, 1
      %s175 = scalar_select %p174, %s173, 1
      %s176 = smul.addr %s175, 4
      %s177 = scalar_lea.vmem %s1, %s176
      %p178 = pneg %p70
      %p179 = pneg %p67
      %s180 = sadd.s32 %s18, %s19
      %p181 = scmp.lt.s32.totalorder %s180, 1
      %s182 = scalar_select %p181, %s180, 1
      %s183 = smul.addr %s182, 4
      %s184 = scalar_lea.vmem %s2, %s183
      %p185 = pneg %p98
      %p186 = pneg %p95
      %p187 = pneg %p124
      %p188 = pneg %p121
      %p189 = scmp.lt.s32.totalorder %s18, 1
      %s190 = scalar_select %p189, %s18, 1
      %s191 = smul.addr %s190, 8
      %s192 = scalar_lea.vmem %s3, %s191
      %s193 = sadd.s32 %s18, %s19
      %p194 = scmp.lt.s32.totalorder %s193, 1
      %s195 = scalar_select %p194, %s193, 1
      %s196 = smul.addr %s195, 4
      %s197 = scalar_lea.vmem %s1, %s196
      %s198 = sadd.s32 %s18, %s19
      %s199 = sadd.s32 %s18, %s19
      %p200 = scmp.lt.s32.totalorder %s199, 1
      %s201 = scalar_select %p200, %s199, 1
      %s202 = smul.addr %s201, 4
      %s203 = scalar_lea.vmem %s2, %s202
      %s204 = sadd.s32 %s18, %s19
      %p205 = scmp.lt.s32.totalorder %s18, 1
      %s206 = scalar_select %p205, %s18, 1
      %s207 = smul.addr %s206, 8
      %s208 = scalar_lea.vmem %s3, %s207
      %p209 = scmp.eq.s32.totalorder %s19, 0
      // Predicated region
      $region33: #{instance_loss.4} parent=31 // pred_check
        %p210 = pneg %p209
      $region34: #{instance_loss.4} parent=31 // pred_check_branch
        %212 = sbr.rel (%p210) target = $region36
      $region35: #{instance_loss.4} parent=31 // pred_region
        %vm213 = vcmask 64512
        %214 = vst.msk [vmem:[%s208] sm:$0xff] %vm213, 0.0
      $region36: #{instance_loss.4} parent=31 // pred_fallthru
        _
      %v215 = vld [vmem:[%s0] sm:$0xff]
      %v216 = vld [vmem:[%s197] sm:$0xf]
      %v217 = vunpack.c.l.bf16 %v216
      %v218 = vld [vmem:[%s203] sm:$0xf]
      %v219 = vunpack.c.l.bf16 %v218
      %vm220 = vcmask 64512
      %v222 = vsel %vm220, %v215, 0
      %224 = vmatprep.subr.mxu0 0.0
      %225 = vmatpush1.msra.mxu0 %v219
      %226 = vmatprep.subr.mxu0 0.0
      %227 = vmatpush1.msra.mxu0 0.0
      %228 = vmatprep.subr.mxu0 0.0
      %229 = vmatpush1.msra.mxu0 0.0
      %230 = vmatprep.subr.mxu0 0.0
      %231 = vmatpush1.msra.mxu0 0.0
      %232 = vmatprep.subr.mxu0 0.0
      %233 = vmatpush1.msra.mxu0 0.0
      %234 = vmatprep.subr.mxu0 0.0
      %235 = vmatpush1.msra.mxu0 0.0
      %236 = vmatprep.subr.mxu0 0.0
      %237 = vmatpush1.msra.mxu0 0.0
      %238 = vmatprep.subr.mxu0 0.0
      %239 = vmatpush1.msra.mxu0 0.0
      %240 = vmatprep.subr.mxu0 0.0
      %241 = vmatpush1.msra.mxu0 0.0
      %242 = vmatprep.subr.mxu0 0.0
      %243 = vmatpush1.msra.mxu0 0.0
      %244 = vmatprep.subr.mxu0 0.0
      %245 = vmatpush1.msra.mxu0 0.0
      %246 = vmatprep.subr.mxu0 0.0
      %247 = vmatpush1.msra.mxu0 0.0
      %248 = vmatprep.subr.mxu0 0.0
      %249 = vmatpush1.msra.mxu0 0.0
      %250 = vmatprep.subr.mxu0 0.0
      %251 = vmatpush1.msra.mxu0 0.0
      %252 = vmatprep.subr.mxu0 0.0
      %253 = vmatpush1.msra.mxu0 0.0
      %254 = vmatprep.subr.mxu0 0.0
      %255 = vmatpush1.msra.mxu0 0.0
      %256 = vmatprep.subr.mxu0 0.0
      %257 = vmatpush1.msra.mxu0 0.0
      %258 = vmatprep.subr.mxu0 0.0
      %259 = vmatpush1.msra.mxu0 0.0
      %260 = vmatprep.subr.mxu0 0.0
      %261 = vmatpush1.msra.mxu0 0.0
      %262 = vmatprep.subr.mxu0 0.0
      %263 = vmatpush1.msra.mxu0 0.0
      %264 = vmatprep.subr.mxu0 0.0
      %265 = vmatpush1.msra.mxu0 0.0
      %266 = vmatprep.subr.mxu0 0.0
      %267 = vmatpush1.msra.mxu0 0.0
      %268 = vmatprep.subr.mxu0 0.0
      %269 = vmatpush1.msra.mxu0 0.0
      %270 = vmatprep.subr.mxu0 0.0
      %271 = vmatpush1.msra.mxu0 0.0
      %272 = vmatprep.subr.mxu0 0.0
      %273 = vmatpush1.msra.mxu0 0.0
      %274 = vmatprep.subr.mxu0 0.0
      %275 = vmatpush1.msra.mxu0 0.0
      %276 = vmatprep.subr.mxu0 0.0
      %277 = vmatpush1.msra.mxu0 0.0
      %278 = vmatprep.subr.mxu0 0.0
      %279 = vmatpush1.msra.mxu0 0.0
      %280 = vmatprep.subr.mxu0 0.0
      %281 = vmatpush1.msra.mxu0 0.0
      %282 = vmatprep.subr.mxu0 0.0
      %283 = vmatpush1.msra.mxu0 0.0
      %284 = vmatprep.subr.mxu0 0.0
      %285 = vmatpush1.msra.mxu0 0.0
      %286 = vmatprep.subr.mxu0 0.0
      %287 = vmatpush1.msra.mxu0 0.0
      %288 = vmatprep.mubr.f32.mxu0 0.0
      %289 = vmatmul.mubr.f32.gmra.mrb[0].mxu0 %v222
      %v290 = vpop.f32.mrb[0].mxu0
      %v291 = vadd.f32 0.0, %v290
      %v292 = vpop.f32.mrb[0].mxu0
      %293 = vdwg.mxu0
      %v294 = vmul.f32 %v215, %v215
      %v295 = vsel %vm220, %v294, 0.0
      %296 = vadd.xlane.f32.xlu0 %v295
      %v297 = vpop.xlane.xlu0 %296
      %v298 = vmul.f32 %v219, %v219
      %v299 = vrot.slane %v298, 4
      %v300 = vadd.f32 %v298, %v299
      %v301 = vrot.slane %v300, 2
      %v302 = vadd.f32 %v300, %v301
      %v303 = vrot.slane %v302, 1
      %v304 = vadd.f32 %v302, %v303
      %v305 = vmul.f32 %v297, %v304
      %v306 = vmax.f32 %v305, 1e-16
      %v307 = vrsqrt.pop %v306
      %v308 = vmul.f32 %v291, %v307
      %v309 = vld [vmem:[%s208] sm:$0xff]
      %310 = vmatprep.subr.mxu0 0.0
      %311 = vmatpush1.xpose.msra.mxu0 %v217
      %312 = vmatprep.subr.mxu0 0.0
      %313 = vmatpush1.xpose.msra.mxu0 0.0
      %314 = vmatprep.subr.mxu0 0.0
      %315 = vmatpush1.xpose.msra.mxu0 0.0
      %316 = vmatprep.subr.mxu0 0.0
      %317 = vmatpush1.xpose.msra.mxu0 0.0
      %318 = vmatprep.subr.mxu0 0.0
      %319 = vmatpush1.xpose.msra.mxu0 0.0
      %320 = vmatprep.subr.mxu0 0.0
      %321 = vmatpush1.xpose.msra.mxu0 0.0
      %322 = vmatprep.subr.mxu0 0.0
      %323 = vmatpush1.xpose.msra.mxu0 0.0
      %324 = vmatprep.subr.mxu0 0.0
      %325 = vmatpush1.xpose.msra.mxu0 0.0
      %326 = vmatprep.subr.mxu0 0.0
      %327 = vmatpush1.xpose.msra.mxu0 0.0
      %328 = vmatprep.subr.mxu0 0.0
      %329 = vmatpush1.xpose.msra.mxu0 0.0
      %330 = vmatprep.subr.mxu0 0.0
      %331 = vmatpush1.xpose.msra.mxu0 0.0
      %332 = vmatprep.subr.mxu0 0.0
      %333 = vmatpush1.xpose.msra.mxu0 0.0
      %334 = vmatprep.subr.mxu0 0.0
      %335 = vmatpush1.xpose.msra.mxu0 0.0
      %336 = vmatprep.subr.mxu0 0.0
      %337 = vmatpush1.xpose.msra.mxu0 0.0
      %338 = vmatprep.subr.mxu0 0.0
      %339 = vmatpush1.xpose.msra.mxu0 0.0
      %340 = vmatprep.subr.mxu0 0.0
      %341 = vmatpush1.xpose.msra.mxu0 0.0
      %342 = vmatprep.subr.mxu0 0.0
      %343 = vmatpush1.xpose.msra.mxu0 0.0
      %344 = vmatprep.subr.mxu0 0.0
      %345 = vmatpush1.xpose.msra.mxu0 0.0
      %346 = vmatprep.subr.mxu0 0.0
      %347 = vmatpush1.xpose.msra.mxu0 0.0
      %348 = vmatprep.subr.mxu0 0.0
      %349 = vmatpush1.xpose.msra.mxu0 0.0
      %350 = vmatprep.subr.mxu0 0.0
      %351 = vmatpush1.xpose.msra.mxu0 0.0
      %352 = vmatprep.subr.mxu0 0.0
      %353 = vmatpush1.xpose.msra.mxu0 0.0
      %354 = vmatprep.subr.mxu0 0.0
      %355 = vmatpush1.xpose.msra.mxu0 0.0
      %356 = vmatprep.subr.mxu0 0.0
      %357 = vmatpush1.xpose.msra.mxu0 0.0
      %358 = vmatprep.subr.mxu0 0.0
      %359 = vmatpush1.xpose.msra.mxu0 0.0
      %360 = vmatprep.subr.mxu0 0.0
      %361 = vmatpush1.xpose.msra.mxu0 0.0
      %362 = vmatprep.subr.mxu0 0.0
      %363 = vmatpush1.xpose.msra.mxu0 0.0
      %364 = vmatprep.subr.mxu0 0.0
      %365 = vmatpush1.xpose.msra.mxu0 0.0
      %366 = vmatprep.subr.mxu0 0.0
      %367 = vmatpush1.xpose.msra.mxu0 0.0
      %368 = vmatprep.subr.mxu0 0.0
      %369 = vmatpush1.xpose.msra.mxu0 0.0
      %370 = vmatprep.subr.mxu0 0.0
      %371 = vmatpush1.xpose.msra.mxu0 0.0
      %372 = vmatprep.subr.mxu0 0.0
      %373 = vmatpush1.xpose.msra.mxu0 0.0
      %374 = vmatprep.mubr.f32.mxu0 0.0
      %375 = vmatmul.mubr.f32.gmra.mrb[0].mxu0 %v308
      %v376 = vpop.f32.mrb[0].mxu0
      %v377 = vadd.f32 0.0, %v376
      %v378 = vpop.f32.mrb[0].mxu0
      %379 = vdwg.mxu0
      %v380 = vadd.f32 %v309, %v377
      %381 = vst.msk [vmem:[%s208] sm:$0xff] %vm220, %v380
      %p382 = scmp.lt.s32.totalorder %s18, 1
      %s383 = scalar_select %p382, %s18, 1
      %s384 = smul.addr %s383, 8
      %s385 = scalar_lea.vmem %s3, %s384
      // Predicated region
      $region37: #{instance_loss.4} parent=31 // pred_check
        %p386 = pneg %p121
      $region38: #{instance_loss.4} parent=31 // pred_check_branch
        %388 = sbr.rel (%p386) target = $region40
      $region39: #{instance_loss.4} parent=31 // pred_region
        _
      $region40: #{instance_loss.4} parent=31 // pred_fallthru
        _
    $region32: #{instance_loss.4} parent=5 // pred_fallthru
      _
    %p389 = scmp.le.s32.totalorder 2, %s9
    // Predicated region
    $region41: #{instance_loss.4} parent=5 // pred_check
      %p390 = pneg %p389
    $region42: #{instance_loss.4} parent=5 // pred_check_branch
      %392 = sbr.rel (%p390) target = $region44
    $region43: #{instance_loss.4} parent=5 // pred_region
      %s393 = ssub.s32 %s9, 2
      // Predicated region
      $region45: #{instance_loss.4} parent=43 // pred_check
        %p394 = pneg %p127
      $region46: #{instance_loss.4} parent=43 // pred_check_branch
        %396 = sbr.rel (%p394) target = $region48
      $region47: #{instance_loss.4} parent=43 // pred_region
        %p397 = scmp.lt.s32.totalorder %s20, 1
        %s398 = scalar_select %p397, %s20, 1
        %s399 = smul.addr %s398, 8
        %s400 = scalar_lea.vmem %s3, %s399
      $region48: #{instance_loss.4} parent=43 // pred_fallthru
        _
    $region44: #{instance_loss.4} parent=5 // pred_fallthru
      _
  $region6: #{instance_loss.4} parent=0 // loop_footer
    %s13 = sadd.s32 1, %s9
  $region7: #{instance_loss.4} parent=0 // loop_footer_branch
    %8 = sbr.rel target = $region3
  $region8: #{instance_loss.4} parent=0 // loop_exit
    _

// kernel: instance_loss.5
$region0: #{instance_loss.5}
  #allocation0 [shape = 'u32[]', space=smem, size = 0x4, offset = 0x4, fixed_abs, tag = 'smem constant byte address 0x4 - core index']
  #allocation1 [shape = 'u32[144,128]{1,0:T(1,128)}', space=vmem, size = 0x12000, scoped, tag = 'internal scratch']
  %s0 = inlined_call_operand.vmem [shape: f32[8,8], index: 0, kind: input, shape index: {}]
  %s1 = inlined_call_operand.vmem [shape: f32[8,3], index: 1, kind: input, shape index: {}]
  %s2 = inlined_call_operand.vmem [shape: f32[1,8], index: 2, kind: input, shape index: {}]
  %s3 = inlined_call_operand.vmem [shape: s32[8,1], index: 3, kind: input, shape index: {}]
  %s4 = inlined_call_operand.vmem [shape: s32[1,8], index: 4, kind: input, shape index: {}]
  %s5 = inlined_call_operand.vmem [shape: f32[8,128], index: 5, kind: output, shape index: {}]
  %s6 = sld [smem:[#allocation0]]
  $region30: #{instance_loss.5} parent=0
    _
  %s8 = ssub.s32 1, %s6
  %s9 = scalar_select 0, %s8, %s6
  // Predicated region
  $region2: #{instance_loss.5} parent=0 // pred_check
    _
  $region3: #{instance_loss.5} parent=0 // pred_check_branch
    %11 = sbr.rel (0) target = $region5
  $region4: #{instance_loss.5} parent=0 // pred_region
    _
  $region5: #{instance_loss.5} parent=0 // pred_fallthru
    _
  // Predicated region
  $region6: #{instance_loss.5} parent=0 // pred_check
    _
  $region7: #{instance_loss.5} parent=0 // pred_check_branch
    %13 = sbr.rel (0) target = $region9
  $region8: #{instance_loss.5} parent=0 // pred_region
    _
  $region9: #{instance_loss.5} parent=0 // pred_fallthru
    _
  // Predicated region
  $region10: #{instance_loss.5} parent=0 // pred_check
    _
  $region11: #{instance_loss.5} parent=0 // pred_check_branch
    %15 = sbr.rel (0) target = $region13
  $region12: #{instance_loss.5} parent=0 // pred_region
    _
  $region13: #{instance_loss.5} parent=0 // pred_fallthru
    _
  // Predicated region
  $region14: #{instance_loss.5} parent=0 // pred_check
    _
  $region15: #{instance_loss.5} parent=0 // pred_check_branch
    %17 = sbr.rel (0) target = $region17
  $region16: #{instance_loss.5} parent=0 // pred_region
    _
  $region17: #{instance_loss.5} parent=0 // pred_fallthru
    _
  // Predicated region
  $region18: #{instance_loss.5} parent=0 // pred_check
    _
  $region19: #{instance_loss.5} parent=0 // pred_check_branch
    %19 = sbr.rel (0) target = $region21
  $region20: #{instance_loss.5} parent=0 // pred_region
    _
  $region21: #{instance_loss.5} parent=0 // pred_fallthru
    _
  %v20 = vld [vmem:[%s0] sm:$0xff]
  %v21 = vld [vmem:[%s1] sm:$0xff]
  %v22 = vld [vmem:[%s2] sm:$0x1]
  %v23 = vld [vmem:[%s3] sm:$0xff]
  %v24 = vld [vmem:[%s4] sm:$0x1]
  %v25 = vmax.f32 %v22, 1.0
  %v27 = vlaneseq
  %v28 = vshrl.u32 %v27, 7
  %v29 = vsub.s32 0, %v28
  %v30 = vrot.slane %v25, %v29
  %v32 = vrcp.pop %v30
  %v33 = vmul.f32 %v20, %v32
  %v34 = vmul.f32 %v21, 8.0
  %v35 = vmul.f32 %v21, %v21
  %v36 = vmax.f32 %v34, 1.0
  %38 = vrot.lane.b32.xlu0 %v36, 2
  %v39 = vpop.permute.xlu0 %38
  %v41 = vrcp.pop %v39
  %v42 = vmul.f32 %v35, %v41
  %44 = vrot.lane.b32.xlu0 %v42, 127
  %v45 = vpop.permute.xlu0 %44
  %v47 = vsub.f32 %v21, %v45
  %v48 = vsub.f32 %v34, 1.0
  %v49 = vmax.f32 %v48, 1.0
  %51 = vrot.lane.b32.xlu0 %v49, 1
  %v52 = vpop.permute.xlu0 %51
  %v54 = vrcp.pop %v52
  %v55 = vmul.f32 %v47, %v54
  %v56 = vmax.f32 %v55, 0.0
  %v57 = vrsqrt.pop %v56
  %v58 = vmul.f32 %v56, %v57
  %vm59 = vcmp.eq.f32.partialorder %v56, inf
  %v60 = vsel %vm59, %v56, %v58
  %vm61 = vcmp.eq.f32.partialorder %v56, 0.0
  %v62 = vand.u32 %v56, 2147483648
  %v63 = vsel %vm61, %v62, %v60
  %v64 = vlaneseq
  %v65 = vshrl.u32 %v64, 7
  %v66 = vlaneseq
  %v67 = vand.u32 %v66, 127
  %vm68 = vcmp.eq.s32.totalorder %v65, %v67
  %v69 = vsel %vm68, 1, 0
  %v70 = vcvt.s32.f32 %v69
  %71 = vset.pattern.permute.xlu0 0
  %72 = vperm.xlu0 %71, %v23
  %v73 = vpop.permute.xlu0 %72
  %v74 = vlaneseq
  %v75 = vshrl.u32 %v74, 7
  %v76 = vsub.s32 0, %v75
  %v77 = vrot.slane %v24, %v76
  %vm78 = vcmp.eq.s32.totalorder %v73, %v77
  %v79 = vsel %vm78, 1, 0
  %v80 = vcvt.s32.f32 %v79
  %v81 = vsub.f32 1.0, %v80
  %v82 = vmul.f32 %v33, %v70
  %vm83 = vcmask 64512
  %v84 = vsel %vm83, %v82, 0.0
  %85 = vadd.xlane.f32.xlu0 %v84
  %v86 = vpop.xlane.xlu0 %85
  %v87 = vmul.f32 %v33, %v80
  %v88 = vsub.f32 1.0, %v70
  %v89 = vmul.f32 %v87, %v88
  %v90 = vsel %vm83, %v89, 0.0
  %91 = vadd.xlane.f32.xlu0 %v90
  %v92 = vpop.xlane.xlu0 %91
  %vm93 = vcmp.eq.s32.totalorder %v73, %v67
  %v94 = vsel %vm93, 1, 0
  %v95 = vcvt.s32.f32 %v94
  %v96 = vrot.slane %v95, 4
  %v97 = vadd.f32 %v95, %v96
  %v98 = vrot.slane %v97, 2
  %v99 = vadd.f32 %v97, %v98
  %v100 = vrot.slane %v99, 1
  %v101 = vadd.f32 %v99, %v100
  %v102 = vmul.f32 %v95, %v86
  %v103 = vrot.slane %v102, 4
  %v104 = vadd.f32 %v102, %v103
  %v105 = vrot.slane %v104, 2
  %v106 = vadd.f32 %v104, %v105
  %v107 = vrot.slane %v106, 1
  %v108 = vadd.f32 %v106, %v107
  %v109 = vmul.f32 %v95, %v92
  %v110 = vrot.slane %v109, 4
  %v111 = vadd.f32 %v109, %v110
  %v112 = vrot.slane %v111, 2
  %v113 = vadd.f32 %v111, %v112
  %v114 = vrot.slane %v113, 1
  %v115 = vadd.f32 %v113, %v114
  %117 = vset.pattern.permute.xlu0 1
  %118 = vperm.xlu0 %117, %v63
  %v119 = vpop.permute.xlu0 %118
  %v121 = vmul.f32 %v95, %v119
  %v122 = vrot.slane %v121, 4
  %v123 = vadd.f32 %v121, %v122
  %v124 = vrot.slane %v123, 2
  %v125 = vadd.f32 %v123, %v124
  %v126 = vrot.slane %v125, 1
  %v127 = vadd.f32 %v125, %v126
  %vm128 = vcmp.gt.f32.partialorder %v101, 1.0
  %v129 = vmax.f32 %v101, 1.0
  %v130 = vsub.f32 %v101, 1.0
  %v131 = vmax.f32 %v130, 1.0
  %v132 = vrcp.pop %v129
  %v133 = vmul.f32 %v108, %v132
  %v134 = vsel %vm128, %v133, %v108
  %v135 = vmul.f32 %v129, %v131
  %v136 = vrcp.pop %v135
  %v137 = vmul.f32 %v115, %v136
  %v138 = vsel %vm128, %v137, %v115
  %v139 = vmul.f32 %v127, %v132
  %v140 = vsel %vm128, %v139, %v127
  %vm141 = vcmp.ge.s32.totalorder %v23, 1
  %vm142 = vcmp.lt.s32.totalorder %v23, 3
  %vm143 = vmand %vm141, %vm142
  %v144 = vsel %vm143, 1, 0
  %v145 = vcvt.s32.f32 %v144
  %vm146 = vcmp.ge.s32.totalorder %v24, 1
  %vm147 = vcmp.lt.s32.totalorder %v24, 3
  %vm148 = vmand %vm146, %vm147
  %v149 = vsel %vm148, 1, 0
  %v150 = vcvt.s32.f32 %v149
  %vm151 = vcmp.ge.s32.totalorder %v23, 3
  %vm152 = vcmp.lt.s32.totalorder %v23, 9
  %vm153 = vmand %vm151, %vm152
  %v154 = vsel %vm153, 1, 0
  %v155 = vcvt.s32.f32 %v154
  %vm156 = vcmp.ge.s32.totalorder %v24, 3
  %vm157 = vcmp.lt.s32.totalorder %v24, 9
  %vm158 = vmand %vm156, %vm157
  %v159 = vsel %vm158, 1, 0
  %v160 = vcvt.s32.f32 %v159
  %vm161 = vcmp.ge.s32.totalorder %v23, 9
  %vm162 = vcmp.lt.s32.totalorder %v23, 11
  %vm163 = vmand %vm161, %vm162
  %v164 = vsel %vm163, 1, 0
  %v165 = vcvt.s32.f32 %v164
  %vm166 = vcmp.ge.s32.totalorder %v24, 9
  %vm167 = vcmp.lt.s32.totalorder %v24, 11
  %vm168 = vmand %vm166, %vm167
  %v169 = vsel %vm168, 1, 0
  %v170 = vcvt.s32.f32 %v169
  %v171 = vadd.f32 %v145, %v155
  %v172 = vadd.f32 %v150, %v160
  %v173 = vmin.f32 %v171, 1.0
  %175 = vset.pattern.permute.xlu0 0
  %176 = vperm.xlu0 %175, %v173
  %v177 = vpop.permute.xlu0 %176
  %v179 = vmul.f32 %v81, %v177
  %v180 = vmin.f32 %v172, 1.0
  %v182 = vlaneseq
  %v183 = vshrl.u32 %v182, 7
  %v184 = vsub.s32 0, %v183
  %v185 = vrot.slane %v180, %v184
  %v187 = vmul.f32 %v179, %v185
  %v188 = vsel %vm83, %v187, 0.0
  %189 = vadd.xlane.f32.xlu0 %v188
  %v190 = vpop.xlane.xlu0 %189
  %v191 = vrot.slane %v190, 4
  %v192 = vadd.f32 %v190, %v191
  %v193 = vrot.slane %v192, 2
  %v194 = vadd.f32 %v192, %v193
  %v195 = vrot.slane %v194, 1
  %v196 = vadd.f32 %v194, %v195
  %v197 = vmul.f32 %v187, %v33
  %v198 = vsel %vm83, %v197, 0.0
  %199 = vadd.xlane.f32.xlu0 %v198
  %v200 = vpop.xlane.xlu0 %199
  %v201 = vrot.slane %v200, 4
  %v202 = vadd.f32 %v200, %v201
  %v203 = vrot.slane %v202, 2
  %v204 = vadd.f32 %v202, %v203
  %v205 = vrot.slane %v204, 1
  %v206 = vadd.f32 %v204, %v205
  %vm207 = vcmp.gt.f32.partialorder %v196, 1.0
  %v208 = vmax.f32 %v196, 1.0
  %v209 = vrcp.pop %v208
  %v210 = vmul.f32 %v206, %v209
  %v211 = vsel %vm207, %v210, %v206
  %v212 = vadd.f32 %v165, %v155
  %v213 = vadd.f32 %v170, %v160
  %v214 = vmin.f32 %v212, 1.0
  %216 = vset.pattern.permute.xlu0 0
  %217 = vperm.xlu0 %216, %v214
  %v218 = vpop.permute.xlu0 %217
  %v220 = vmul.f32 %v81, %v218
  %v221 = vmin.f32 %v213, 1.0
  %v223 = vlaneseq
  %v224 = vshrl.u32 %v223, 7
  %v225 = vsub.s32 0, %v224
  %v226 = vrot.slane %v221, %v225
  %v228 = vmul.f32 %v220, %v226
  %v229 = vsel %vm83, %v228, 0.0
  %230 = vadd.xlane.f32.xlu0 %v229
  %v231 = vpop.xlane.xlu0 %230
  %v232 = vrot.slane %v231, 4
  %v233 = vadd.f32 %v231, %v232
  %v234 = vrot.slane %v233, 2
  %v235 = vadd.f32 %v233, %v234
  %v236 = vrot.slane %v235, 1
  %v237 = vadd.f32 %v235, %v236
  %v238 = vmul.f32 %v228, %v33
  %v239 = vsel %vm83, %v238, 0.0
  %240 = vadd.xlane.f32.xlu0 %v239
  %v241 = vpop.xlane.xlu0 %240
  %v242 = vrot.slane %v241, 4
  %v243 = vadd.f32 %v241, %v242
  %v244 = vrot.slane %v243, 2
  %v245 = vadd.f32 %v243, %v244
  %v246 = vrot.slane %v245, 1
  %v247 = vadd.f32 %v245, %v246
  %vm248 = vcmp.gt.f32.partialorder %v237, 1.0
  %v249 = vmax.f32 %v237, 1.0
  %v250 = vrcp.pop %v249
  %v251 = vmul.f32 %v247, %v250
  %v252 = vsel %vm248, %v251, %v247
  %v253 = vadd.f32 %v145, %v165
  %v254 = vadd.f32 %v150, %v170
  %v255 = vmin.f32 %v253, 1.0
  %257 = vset.pattern.permute.xlu0 0
  %258 = vperm.xlu0 %257, %v255
  %v259 = vpop.permute.xlu0 %258
  %v261 = vmul.f32 %v81, %v259
  %v262 = vmin.f32 %v254, 1.0
  %v264 = vlaneseq
  %v265 = vshrl.u32 %v264, 7
  %v266 = vsub.s32 0, %v265
  %v267 = vrot.slane %v262, %v266
  %v269 = vmul.f32 %v261, %v267
  %v270 = vsel %vm83, %v269, 0.0
  %271 = vadd.xlane.f32.xlu0 %v270
  %v272 = vpop.xlane.xlu0 %271
  %v273 = vrot.slane %v272, 4
  %v274 = vadd.f32 %v272, %v273
  %v275 = vrot.slane %v274, 2
  %v276 = vadd.f32 %v274, %v275
  %v277 = vrot.slane %v276, 1
  %v278 = vadd.f32 %v276, %v277
  %v279 = vmul.f32 %v269, %v33
  %v280 = vsel %vm83, %v279, 0.0
  %281 = vadd.xlane.f32.xlu0 %v280
  %v282 = vpop.xlane.xlu0 %281
  %v283 = vrot.slane %v282, 4
  %v284 = vadd.f32 %v282, %v283
  %v285 = vrot.slane %v284, 2
  %v286 = vadd.f32 %v284, %v285
  %v287 = vrot.slane %v286, 1
  %v288 = vadd.f32 %v286, %v287
  %vm289 = vcmp.gt.f32.partialorder %v278, 1.0
  %v290 = vmax.f32 %v278, 1.0
  %v291 = vrcp.pop %v290
  %v292 = vmul.f32 %v288, %v291
  %v293 = vsel %vm289, %v292, %v288
  %vm294 = vcmp.eq.s32.totalorder %v67, 0
  %v295 = vsel %vm294, 1, 0
  %v296 = vcvt.s32.f32 %v295
  %v297 = vmul.f32 %v211, %v296
  %vm298 = vcmp.eq.s32.totalorder %v67, 1
  %v299 = vsel %vm298, 1, 0
  %v300 = vcvt.s32.f32 %v299
  %v301 = vmul.f32 %v252, %v300
  %v302 = vadd.f32 %v297, %v301
  %vm303 = vcmp.eq.s32.totalorder %v67, 2
  %v304 = vsel %vm303, 1, 0
  %v305 = vcvt.s32.f32 %v304
  %v306 = vmul.f32 %v293, %v305
  %v307 = vadd.f32 %v302, %v306
  %vm308 = vcmp.eq.s32.totalorder %v65, 0
  %v309 = vsel %vm308, 1, 0
  %v310 = vcvt.s32.f32 %v309
  %v311 = vmul.f32 %v310, %v134
  %vm312 = vcmp.eq.s32.totalorder %v65, 1
  %v313 = vsel %vm312, 1, 0
  %v314 = vcvt.s32.f32 %v313
  %v315 = vmul.f32 %v314, %v138
  %v316 = vadd.f32 %v311, %v315
  %vm317 = vcmp.eq.s32.totalorder %v65, 2
  %v318 = vsel %vm317, 1, 0
  %v319 = vcvt.s32.f32 %v318
  %v320 = vmul.f32 %v319, %v140
  %v321 = vadd.f32 %v316, %v320
  %vm322 = vcmp.eq.s32.totalorder %v65, 3
  %v323 = vsel %vm322, 1, 0
  %v324 = vcvt.s32.f32 %v323
  %v325 = vmul.f32 %v324, %v307
  %v326 = vadd.f32 %v321, %v325
  %327 = vst [vmem:[%s5] sm:$0xff] %v326
  // Predicated region
  $region22: #{instance_loss.5} parent=0 // pred_check
    _
  $region23: #{instance_loss.5} parent=0 // pred_check_branch
    %329 = sbr.rel (0) target = $region25
  $region24: #{instance_loss.5} parent=0 // pred_region
    _
  $region25: #{instance_loss.5} parent=0 // pred_fallthru
    _
  // Predicated region
  $region26: #{instance_loss.5} parent=0 // pred_check
    _
  $region27: #{instance_loss.5} parent=0 // pred_check_branch
    %331 = sbr.rel (0) target = $region29
  $region28: #{instance_loss.5} parent=0 // pred_region
    _
  $region29: #{instance_loss.5} parent=0 // pred_fallthru
    _

</llo_original>
